<compile_context>
chip_gen: v7x
topology: tpu7x:2x2x1
jax: 0.10.0
libtpu: 0.0.40
codegen_flags: <defaults>
</compile_context>

<pallas_src>
import functools

import jax
import jax.numpy as jnp
from jax.experimental import pallas as pl
from jax.experimental.pallas import tpu as pltpu


def _self_attn_kernel(xq_ref, xkv_ref, wq_ref, bq_ref, wk_ref, bk_ref,
                      wv_ref, bv_ref, o_ref, *, compute_dtype):
    cdt = compute_dtype
    f32 = jnp.float32
    xq = xq_ref[0]                                   # (TQ, C) query rows
    xkv = xkv_ref[0]                                 # (N,  C) full image

    # 1x1 convolutions == channel matmuls (bf16 operands, f32 accumulation).
    q = jnp.dot(xq.astype(cdt), wq_ref[...].astype(cdt),
                preferred_element_type=f32) + bq_ref[...]           # (TQ, C8)
    k = jnp.dot(xkv.astype(cdt), wk_ref[...].astype(cdt),
                preferred_element_type=f32) + bk_ref[...]           # (N, C8)
    v = jnp.dot(xkv.astype(cdt), wv_ref[...].astype(cdt),
                preferred_element_type=f32) + bv_ref[...]           # (N, C) gamma pre-folded

    # energy[i, j] = q_i . k_j  (contract the C/8 axis of both; no transpose copy)
    e = jax.lax.dot_general(q.astype(cdt), k.astype(cdt),
                            dimension_numbers=(((1,), (1,)), ((), ())),
                            preferred_element_type=f32)             # (TQ, N)

    # Stable softmax over keys; normalize after the PV matmul (cheaper).
    m = jnp.max(e, axis=-1, keepdims=True)                          # (TQ, 1)
    p = jnp.exp(e - m)                                              # (TQ, N)
    denom = jnp.sum(p, axis=-1, keepdims=True)                      # (TQ, 1)
    pv = jnp.dot(p.astype(cdt), v.astype(cdt),
                 preferred_element_type=f32)                        # (TQ, C)
    out = pv * pl.reciprocal(denom, approx=True)                    # softmax(e) @ v

    # Residual: y = gamma * out + x   (gamma already folded into v).
    o_ref[0] = (out + xq.astype(f32)).astype(o_ref.dtype)


def self_attn(x_nchw, wq, bq, wk, bk, wv, bv, gamma, *, q_tile=256,
              compute_dtype=jnp.bfloat16):
    """Self_Attn forward.

    x_nchw: (B, C, W, H) PyTorch layout.
    wq, wk: (C//8, C, 1, 1); bq, bk: (C//8,)
    wv:     (C, C, 1, 1);    bv:     (C,)
    gamma:  (1,)
    """
    B, C, Wd, Hd = x_nchw.shape
    C8 = wq.shape[0]
    N = Wd * Hd

    # NCHW -> (B, N, C): channels on lanes; spatial flattened exactly like
    # torch .view(B, -1, W*H) (i = w*H + h) so positions line up for the
    # residual add and the final un-flatten.
    x = jnp.transpose(x_nchw, (0, 2, 3, 1)).reshape(B, N, C)

    g = gamma.reshape(()).astype(jnp.float32)
    wq_k = wq.reshape(C8, C).T                      # (C, C8)
    wk_k = wk.reshape(C8, C).T                      # (C, C8)
    # out = attn @ (x Wv + bv) is linear in (Wv, bv) => gamma*out is obtained
    # exactly by pre-scaling the value-conv parameters.
    wv_k = wv.reshape(C, C).T * g                   # (C, C)
    bq_k = bq.reshape(1, C8)
    bk_k = bk.reshape(1, C8)
    bv_k = (bv * g).reshape(1, C)

    tq = q_tile if (N % q_tile == 0) else N         # query-row tile
    nq = N // tq

    flops = 2 * B * nq * (tq * C * C8 + N * C * C8 + N * C * C
                          + tq * N * C8 + tq * N * C)
    bytes_accessed = 4 * (B * N * C * (2 + nq)
                          + B * nq * (2 * C * C8 + C * C + 2 * C8 + C))
    cost = pl.CostEstimate(flops=flops, transcendentals=B * N * N,
                           bytes_accessed=bytes_accessed)

    out = pl.pallas_call(
        functools.partial(_self_attn_kernel, compute_dtype=compute_dtype),
        out_shape=jax.ShapeDtypeStruct((B, N, C), x.dtype),
        grid_spec=pltpu.PrefetchScalarGridSpec(
            num_scalar_prefetch=0,
            grid=(B, nq),
            in_specs=[
                pl.BlockSpec((1, tq, C), lambda b, q: (b, q, 0)),   # query rows
                pl.BlockSpec((1, N, C), lambda b, q: (b, 0, 0)),    # full image for K/V
                pl.BlockSpec((C, C8), lambda b, q: (0, 0)),
                pl.BlockSpec((1, C8), lambda b, q: (0, 0)),
                pl.BlockSpec((C, C8), lambda b, q: (0, 0)),
                pl.BlockSpec((1, C8), lambda b, q: (0, 0)),
                pl.BlockSpec((C, C), lambda b, q: (0, 0)),
                pl.BlockSpec((1, C), lambda b, q: (0, 0)),
            ],
            out_specs=pl.BlockSpec((1, tq, C), lambda b, q: (b, q, 0)),
        ),
        compiler_params=pltpu.CompilerParams(
            dimension_semantics=("parallel", "parallel"),
            vmem_limit_bytes=32 * 1024 * 1024),
        cost_estimate=cost,
    )(x, x, wq_k, bq_k, wk_k, bk_k, wv_k, bv_k)

    # (B, N, C) -> (B, C, W, H)
    return jnp.transpose(out.reshape(B, Wd, Hd, C), (0, 3, 1, 2))


def _reference(x, wq, bq, wk, bk, wv, bv, gamma):
    # Pure-JAX mirror of the PyTorch Self_Attn forward (NCHW).
    B, C, Wd, Hd = x.shape
    N = Wd * Hd
    c8 = wq.shape[0]

    def conv1x1(inp, w, b):
        y = jnp.einsum('bcwh,oc->bowh', inp, w.reshape(w.shape[0], C))
        return y + b.reshape(1, -1, 1, 1)

    q = conv1x1(x, wq, bq).reshape(B, c8, N)
    k = conv1x1(x, wk, bk).reshape(B, c8, N)
    v = conv1x1(x, wv, bv).reshape(B, C, N)
    energy = jnp.einsum('bci,bcj->bij', q, k)          # bmm(q^T, k)
    attn = jax.nn.softmax(energy, axis=-1)
    out = jnp.einsum('bcj,bij->bci', v, attn)          # bmm(v, attn^T)
    out = out.reshape(B, C, Wd, Hd)
    return gamma.reshape(()) * out + x


if __name__ == "__main__":
    # C=128 keeps every kernel-facing tensor lane-dense (C//8 = 16 queries/keys).
    B, C, Wd, Hd = 2, 128, 16, 16
    C8 = C // 8
    key = jax.random.PRNGKey(0)
    ks = jax.random.split(key, 8)

    x = jax.random.normal(ks[0], (B, C, Wd, Hd), dtype=jnp.float32)
    wq = jax.random.normal(ks[1], (C8, C, 1, 1), dtype=jnp.float32) * 0.05
    bq = jax.random.normal(ks[2], (C8,), dtype=jnp.float32) * 0.05
    wk = jax.random.normal(ks[3], (C8, C, 1, 1), dtype=jnp.float32) * 0.05
    bk = jax.random.normal(ks[4], (C8,), dtype=jnp.float32) * 0.05
    wv = jax.random.normal(ks[5], (C, C, 1, 1), dtype=jnp.float32) * 0.05
    bv = jax.random.normal(ks[6], (C,), dtype=jnp.float32) * 0.05
    # The module initializes gamma = 0 (identity); use a nonzero gamma so the
    # attention path is actually exercised by the check.
    gamma = jnp.array([1.0], dtype=jnp.float32)

    out = jax.block_until_ready(
        self_attn(x, wq, bq, wk, bk, wv, bv, gamma, q_tile=128))
    ref = jax.block_until_ready(_reference(x, wq, bq, wk, bk, wv, bv, gamma))

    assert out.shape == x.shape
    # bf16 MXU operands (f32 accumulation) => small softmax-logit perturbation;
    # tolerance covers it while still catching any structural error (~0.5 mag).
    assert jnp.allclose(out, ref, atol=5e-2, rtol=5e-2), "kernel/reference mismatch"
    print("KERNEL_OK")
</pallas_src>

<mosaic_0001>
module attributes {stable_mosaic.version = 11 : i64} {
  func.func @_self_attn_kernel(%arg0: i32, %arg1: i32, %arg2: memref<1x128x128xf32, #tpu.memory_space<vmem>>, %arg3: memref<1x256x128xf32, #tpu.memory_space<vmem>>, %arg4: memref<128x16xf32, #tpu.memory_space<vmem>>, %arg5: memref<1x16xf32, #tpu.memory_space<vmem>>, %arg6: memref<128x16xf32, #tpu.memory_space<vmem>>, %arg7: memref<1x16xf32, #tpu.memory_space<vmem>>, %arg8: memref<128x128xf32, #tpu.memory_space<vmem>>, %arg9: memref<1x128xf32, #tpu.memory_space<vmem>>, %arg10: memref<1x128x128xf32, #tpu.memory_space<vmem>>) attributes {dimension_semantics = [#tpu.dimension_semantics<parallel>, #tpu.dimension_semantics<parallel>], iteration_bounds = array<i64: 2, 2>, scalar_prefetch = 0 : i64, scratch_operands = 0 : i64, tpu.core_type = #tpu.core_type<tc>, window_params = [{transform_indices = @transform_0, window_bounds = array<i64: 1, 128, 128>}, {transform_indices = @transform_1, window_bounds = array<i64: 1, 256, 128>}, {pipeline_mode = #tpu.pipeline_mode<synchronous>, transform_indices = @transform_2, window_bounds = array<i64: 128, 16>}, {pipeline_mode = #tpu.pipeline_mode<synchronous>, transform_indices = @transform_3, window_bounds = array<i64: 1, 16>}, {pipeline_mode = #tpu.pipeline_mode<synchronous>, transform_indices = @transform_4, window_bounds = array<i64: 128, 16>}, {pipeline_mode = #tpu.pipeline_mode<synchronous>, transform_indices = @transform_5, window_bounds = array<i64: 1, 16>}, {pipeline_mode = #tpu.pipeline_mode<synchronous>, transform_indices = @transform_6, window_bounds = array<i64: 128, 128>}, {pipeline_mode = #tpu.pipeline_mode<synchronous>, transform_indices = @transform_7, window_bounds = array<i64: 1, 128>}, {transform_indices = @transform_8, window_bounds = array<i64: 1, 128, 128>}]} {
    %c0 = arith.constant 0 : index
    %c0_0 = arith.constant 0 : index
    %c0_1 = arith.constant 0 : index
    %0 = vector.load %arg2[%c0, %c0_0, %c0_1] : memref<1x128x128xf32, #tpu.memory_space<vmem>>, vector<1x128x128xf32>
    %1 = vector.shape_cast %0 : vector<1x128x128xf32> to vector<128x128xf32>
    %c0_2 = arith.constant 0 : index
    %c0_3 = arith.constant 0 : index
    %c0_4 = arith.constant 0 : index
    %2 = vector.load %arg3[%c0_2, %c0_3, %c0_4] : memref<1x256x128xf32, #tpu.memory_space<vmem>>, vector<1x256x128xf32>
    %3 = vector.shape_cast %2 : vector<1x256x128xf32> to vector<256x128xf32>
    %4 = arith.truncf %1 : vector<128x128xf32> to vector<128x128xbf16>
    %c0_5 = arith.constant 0 : index
    %c0_6 = arith.constant 0 : index
    %5 = vector.load %arg4[%c0_5, %c0_6] : memref<128x16xf32, #tpu.memory_space<vmem>>, vector<128x16xf32>
    %6 = arith.truncf %5 : vector<128x16xf32> to vector<128x16xbf16>
    %cst = arith.constant dense<0.000000e+00> : vector<128x16xf32>
    %7 = tpu.matmul %4, %6, %cst {dimension_numbers = #tpu.dot_dimension_numbers<[1], [0], [0], [1], [0, 0, 1, 1], [], []>} : vector<128x128xbf16>, vector<128x16xbf16>, vector<128x16xf32> -> vector<128x16xf32>
    %c0_7 = arith.constant 0 : index
    %c0_8 = arith.constant 0 : index
    %8 = vector.load %arg5[%c0_7, %c0_8] : memref<1x16xf32, #tpu.memory_space<vmem>>, vector<1x16xf32>
    %9 = vector.broadcast %8 : vector<1x16xf32> to vector<128x16xf32>
    %10 = arith.addf %7, %9 : vector<128x16xf32>
    %11 = arith.truncf %3 : vector<256x128xf32> to vector<256x128xbf16>
    %c0_9 = arith.constant 0 : index
    %c0_10 = arith.constant 0 : index
    %12 = vector.load %arg6[%c0_9, %c0_10] : memref<128x16xf32, #tpu.memory_space<vmem>>, vector<128x16xf32>
    %13 = arith.truncf %12 : vector<128x16xf32> to vector<128x16xbf16>
    %cst_11 = arith.constant dense<0.000000e+00> : vector<256x16xf32>
    %14 = tpu.matmul %11, %13, %cst_11 {dimension_numbers = #tpu.dot_dimension_numbers<[1], [0], [0], [1], [0, 0, 1, 1], [], []>} : vector<256x128xbf16>, vector<128x16xbf16>, vector<256x16xf32> -> vector<256x16xf32>
    %c0_12 = arith.constant 0 : index
    %c0_13 = arith.constant 0 : index
    %15 = vector.load %arg7[%c0_12, %c0_13] : memref<1x16xf32, #tpu.memory_space<vmem>>, vector<1x16xf32>
    %16 = vector.broadcast %15 : vector<1x16xf32> to vector<256x16xf32>
    %17 = arith.addf %14, %16 : vector<256x16xf32>
    %18 = arith.truncf %3 : vector<256x128xf32> to vector<256x128xbf16>
    %c0_14 = arith.constant 0 : index
    %c0_15 = arith.constant 0 : index
    %19 = vector.load %arg8[%c0_14, %c0_15] : memref<128x128xf32, #tpu.memory_space<vmem>>, vector<128x128xf32>
    %20 = arith.truncf %19 : vector<128x128xf32> to vector<128x128xbf16>
    %cst_16 = arith.constant dense<0.000000e+00> : vector<256x128xf32>
    %21 = tpu.matmul %18, %20, %cst_16 {dimension_numbers = #tpu.dot_dimension_numbers<[1], [0], [0], [1], [0, 0, 1, 1], [], []>} : vector<256x128xbf16>, vector<128x128xbf16>, vector<256x128xf32> -> vector<256x128xf32>
    %c0_17 = arith.constant 0 : index
    %c0_18 = arith.constant 0 : index
    %22 = vector.load %arg9[%c0_17, %c0_18] : memref<1x128xf32, #tpu.memory_space<vmem>>, vector<1x128xf32>
    %23 = vector.broadcast %22 : vector<1x128xf32> to vector<256x128xf32>
    %24 = arith.addf %21, %23 : vector<256x128xf32>
    %25 = arith.truncf %10 : vector<128x16xf32> to vector<128x16xbf16>
    %26 = arith.truncf %17 : vector<256x16xf32> to vector<256x16xbf16>
    %cst_19 = arith.constant dense<0.000000e+00> : vector<128x256xf32>
    %27 = tpu.matmul %25, %26, %cst_19 {dimension_numbers = #tpu.dot_dimension_numbers<[1], [1], [0], [0], [0, 0, 1, 0], [], []>} : vector<128x16xbf16>, vector<256x16xbf16>, vector<128x256xf32> -> vector<128x256xf32>
    %cst_20 = arith.constant dense<0xFF800000> : vector<128xf32>
    %28 = vector.multi_reduction <maximumf>, %27, %cst_20 [1] : vector<128x256xf32> to vector<128xf32>
    %29 = vector.shape_cast %28 : vector<128xf32> to vector<128x1xf32>
    %30 = vector.broadcast %29 : vector<128x1xf32> to vector<128x256xf32>
    %31 = arith.subf %27, %30 : vector<128x256xf32>
    %32 = math.exp %31 : vector<128x256xf32>
    %cst_21 = arith.constant dense<0.000000e+00> : vector<128xf32>
    %33 = vector.multi_reduction <add>, %32, %cst_21 [1] : vector<128x256xf32> to vector<128xf32>
    %34 = vector.shape_cast %33 : vector<128xf32> to vector<128x1xf32>
    %35 = arith.truncf %32 : vector<128x256xf32> to vector<128x256xbf16>
    %36 = arith.truncf %24 : vector<256x128xf32> to vector<256x128xbf16>
    %cst_22 = arith.constant dense<0.000000e+00> : vector<128x128xf32>
    %37 = tpu.matmul %35, %36, %cst_22 {dimension_numbers = #tpu.dot_dimension_numbers<[1], [0], [0], [1], [0, 0, 1, 1], [], []>} : vector<128x256xbf16>, vector<256x128xbf16>, vector<128x128xf32> -> vector<128x128xf32>
    %38 = tpu.reciprocal %34 {approx = true} : vector<128x1xf32> -> vector<128x1xf32>
    %39 = vector.broadcast %38 : vector<128x1xf32> to vector<128x128xf32>
    %40 = arith.mulf %37, %39 : vector<128x128xf32>
    %41 = arith.addf %40, %1 : vector<128x128xf32>
    %c0_23 = arith.constant 0 : index
    %c0_24 = arith.constant 0 : index
    %c0_25 = arith.constant 0 : index
    %42 = vector.load %arg10[%c0_23, %c0_24, %c0_25] : memref<1x128x128xf32, #tpu.memory_space<vmem>>, vector<1x128x128xf32>
    %43 = vector.shape_cast %42 : vector<1x128x128xf32> to vector<128x128xf32>
    %44 = vector.shape_cast %41 : vector<128x128xf32> to vector<1x128x128xf32>
    tpu.vector_store %arg10[%c0_23, %c0_24, %c0_25], %44 {strides = array<i32>} : memref<1x128x128xf32, #tpu.memory_space<vmem>>, vector<1x128x128xf32>,
    return
  }
  func.func @transform_0(%arg0: i32, %arg1: i32) -> (i32, i32, i32) {
    %c0_i32 = arith.constant 0 : i32
    %c0_i32_0 = arith.constant 0 : i32
    return %arg0, %arg1, %c0_i32 : i32, i32, i32
  }
  func.func @transform_1(%arg0: i32, %arg1: i32) -> (i32, i32, i32) {
    %c0_i32 = arith.constant 0 : i32
    %c0_i32_0 = arith.constant 0 : i32
    %c0_i32_1 = arith.constant 0 : i32
    return %arg0, %c0_i32, %c0_i32_0 : i32, i32, i32
  }
  func.func @transform_2(%arg0: i32, %arg1: i32) -> (i32, i32) {
    %c0_i32 = arith.constant 0 : i32
    %c0_i32_0 = arith.constant 0 : i32
    %c0_i32_1 = arith.constant 0 : i32
    return %c0_i32, %c0_i32_0 : i32, i32
  }
  func.func @transform_3(%arg0: i32, %arg1: i32) -> (i32, i32) {
    %c0_i32 = arith.constant 0 : i32
    %c0_i32_0 = arith.constant 0 : i32
    %c0_i32_1 = arith.constant 0 : i32
    return %c0_i32, %c0_i32_0 : i32, i32
  }
  func.func @transform_4(%arg0: i32, %arg1: i32) -> (i32, i32) {
    %c0_i32 = arith.constant 0 : i32
    %c0_i32_0 = arith.constant 0 : i32
    %c0_i32_1 = arith.constant 0 : i32
    return %c0_i32, %c0_i32_0 : i32, i32
  }
  func.func @transform_5(%arg0: i32, %arg1: i32) -> (i32, i32) {
    %c0_i32 = arith.constant 0 : i32
    %c0_i32_0 = arith.constant 0 : i32
    %c0_i32_1 = arith.constant 0 : i32
    return %c0_i32, %c0_i32_0 : i32, i32
  }
  func.func @transform_6(%arg0: i32, %arg1: i32) -> (i32, i32) {
    %c0_i32 = arith.constant 0 : i32
    %c0_i32_0 = arith.constant 0 : i32
    %c0_i32_1 = arith.constant 0 : i32
    return %c0_i32, %c0_i32_0 : i32, i32
  }
  func.func @transform_7(%arg0: i32, %arg1: i32) -> (i32, i32) {
    %c0_i32 = arith.constant 0 : i32
    %c0_i32_0 = arith.constant 0 : i32
    %c0_i32_1 = arith.constant 0 : i32
    return %c0_i32, %c0_i32_0 : i32, i32
  }
  func.func @transform_8(%arg0: i32, %arg1: i32) -> (i32, i32, i32) {
    %c0_i32 = arith.constant 0 : i32
    %c0_i32_0 = arith.constant 0 : i32
    return %arg0, %arg1, %c0_i32 : i32, i32, i32
  }
}

</mosaic_0001>

<llo_original>
// kernel: tpu_custom_call.1
$region0: #{tpu_custom_call.1}
  #allocation0 [shape = 'u32[]', space=smem, size = 0x4, offset = 0x4, fixed_abs, tag = 'smem constant byte address 0x4 - core index']
  #allocation1 [shape = 'u32[144,128]{1,0:T(1,128)}', space=vmem, size = 0x12000, scoped, tag = 'internal scratch']
  %s0 = inlined_call_operand.hbm [shape: f32[2,256,128], index: 0, kind: input, shape index: {}]
  %s1 = inlined_call_operand.hbm [shape: f32[2,256,128], index: 1, kind: input, shape index: {}]
  %s2 = inlined_call_operand.vmem [shape: f32[128,16], index: 2, kind: input, shape index: {}]
  %s3 = inlined_call_operand.vmem [shape: f32[1,16], index: 3, kind: input, shape index: {}]
  %s4 = inlined_call_operand.vmem [shape: f32[128,16], index: 4, kind: input, shape index: {}]
  %s5 = inlined_call_operand.vmem [shape: f32[1,16], index: 5, kind: input, shape index: {}]
  %s6 = inlined_call_operand.vmem [shape: f32[128,128], index: 6, kind: input, shape index: {}]
  %s7 = inlined_call_operand.vmem [shape: f32[1,128], index: 7, kind: input, shape index: {}]
  %s8 = inlined_call_operand.hbm [shape: f32[2,256,128], index: 8, kind: output, shape index: {}]
  %s9 = sld [smem:[#allocation0]]
  $region73: #{tpu_custom_call.1} parent=0
    _
  %s11 = ssub.s32 1, %s9
  %s12 = scalar_select 0, %s11, %s9
  $region1: #{tpu_custom_call.1} parent=0
    #allocation2 [shape = 'u8[131072]{0}', space=vmem, size = 0x20000, scoped, tag = 'input window, operand 0']
    #allocation3 [shape = 's32[2]{0}', space=sflag, size = 0x8, scoped, tag = 'scoped memory for tpu_custom_call.1']
    #allocation4 [shape = 's32[2]{0}', space=sflag, size = 0x8, scoped, tag = 'scoped memory for tpu_custom_call.1']
    #allocation5 [shape = 'u8[262144]{0}', space=vmem, size = 0x40000, scoped, tag = 'input window, operand 1']
    #allocation6 [shape = 's32[2]{0}', space=sflag, size = 0x8, scoped, tag = 'scoped memory for tpu_custom_call.1']
    #allocation7 [shape = 'u8[131072]{0}', space=vmem, size = 0x20000, scoped, tag = 'output window, operand 0']
    %13 = vsyncpa [#allocation3], 0
    %s14 = scalar_lea.sflag [#allocation3], 1
    %15 = vsyncpa %s14, 0
    %16 = vsyncpa [#allocation6], 0
    %s17 = scalar_lea.sflag [#allocation6], 1
    %18 = vsyncpa %s17, 0
    %19 = vsyncpa [#allocation4], 0
    %s20 = scalar_lea.sflag [#allocation4], 1
    %21 = vsyncpa %s20, 0
    loop: start=0, step=1, limit=6
    $region2: #{tpu_custom_call.1} parent=1 // loop_pre_header
      _
    $region3: #{tpu_custom_call.1} parent=1 // loop_header
      %s23 = sphi 0, %s27
      %p24 = scmp.ge.s32.totalorder %s23, 6
      %s30 = sphi 0, %s42
      %s31 = sphi 0, %s38
      %s32 = sphi 0, %s30
      %s33 = sphi 0, %s31
      %s34 = sphi 0, %s32
      %s35 = sphi 0, %s33
      %s47 = sphi 0, %s49
      %s50 = sphi 0, %s47
      %s51 = sphi 0, %s50
      %s67 = sphi 0, %s51
      %s73 = sphi 0, %s75
      %s76 = sphi 0, %s73
      %s77 = sphi 0, %s76
      %s93 = sphi 0, %s77
      %s97 = sphi 0, %s97
      %s99 = sphi 0, %s97
      %s100 = sphi 0, %s99
      %s114 = sphi 0, %s100
      %s118 = sphi 0, %s118
      %s120 = sphi 0, %s118
      %s121 = sphi 0, %s120
      %s135 = sphi 0, %s121
      %s139 = sphi 0, %s139
      %s141 = sphi 0, %s139
      %s142 = sphi 0, %s141
      %s156 = sphi 0, %s142
      %s160 = sphi 0, %s160
      %s162 = sphi 0, %s160
      %s163 = sphi 0, %s162
      %s177 = sphi 0, %s163
      %s181 = sphi 0, %s181
      %s183 = sphi 0, %s181
      %s184 = sphi 0, %s183
      %s198 = sphi 0, %s184
      %s202 = sphi 0, %s202
      %s204 = sphi 0, %s202
      %s205 = sphi 0, %s204
      %s219 = sphi 0, %s205
      %s227 = sphi 0, %s229
      %s230 = sphi 0, %s227
      %s231 = sphi 0, %s230
      %s247 = sphi 0, %s231
    $region4: #{tpu_custom_call.1} parent=1 // loop_header_branch
      %26 = sbr.rel (%p24) target = $region8
    $region5: #{tpu_custom_call.1} parent=1 // loop_body
      %s28 = ssub.s32 %s23, 1
      %s29 = ssub.s32 %s23, 2
      %s36 = sadd.s32 1, %s31
      %p37 = scmp.ge.s32.totalorder %s36, 2
      %s38 = scalar_select %p37, 0, %s36
      %s39 = sadd.s32 1, %s30
      %s40 = scalar_select %p37, %s39, %s30
      %p41 = scmp.ge.s32.totalorder %s40, 2
      %s42 = scalar_select %p41, 0, %s40
      %s43 = ssub.s32 %s30, %s42
      %s44 = ssub.s32 %s31, %s38
      %s45 = sor.u32 %s43, %s44
      %p46 = scmp.eq.s32.totalorder %s45, 0
      %s48 = sadd.s32 %s47, 1
      %s49 = scalar_select %p46, %s47, %s48
      %p52 = pneg %p46
      %p53 = scmp.eq.s32.totalorder %s23, 3
      %p54 = por %p52, %p53
      %p55 = scmp.ne.s32.totalorder %s47, %s50
      %p56 = scmp.eq.s32.totalorder %s23, 0
      %p57 = por %p55, %p56
      %p58 = scmp.ne.s32.totalorder %s47, %s50
      %p59 = scmp.eq.s32.totalorder %s28, 3
      %p60 = por %p58, %p59
      %p61 = scmp.ne.s32.totalorder %s50, %s51
      %p62 = scmp.eq.s32.totalorder %s28, 0
      %p63 = por %p61, %p62
      %p64 = scmp.ne.s32.totalorder %s50, %s51
      %p65 = scmp.eq.s32.totalorder %s29, 3
      %p66 = por %p64, %p65
      %p68 = scmp.ne.s32.totalorder %s51, %s67
      %p69 = scmp.eq.s32.totalorder %s29, 0
      %p70 = por %p68, %p69
      %s71 = ssub.s32 %s30, %s42
      %p72 = scmp.eq.s32.totalorder %s71, 0
      %s74 = sadd.s32 %s73, 1
      %s75 = scalar_select %p72, %s73, %s74
      %p78 = pneg %p72
      %p79 = scmp.eq.s32.totalorder %s23, 3
      %p80 = por %p78, %p79
      %p81 = scmp.ne.s32.totalorder %s73, %s76
      %p82 = scmp.eq.s32.totalorder %s23, 0
      %p83 = por %p81, %p82
      %p84 = scmp.ne.s32.totalorder %s73, %s76
      %p85 = scmp.eq.s32.totalorder %s28, 3
      %p86 = por %p84, %p85
      %p87 = scmp.ne.s32.totalorder %s76, %s77
      %p88 = scmp.eq.s32.totalorder %s28, 0
      %p89 = por %p87, %p88
      %p90 = scmp.ne.s32.totalorder %s76, %s77
      %p91 = scmp.eq.s32.totalorder %s29, 3
      %p92 = por %p90, %p91
      %p94 = scmp.ne.s32.totalorder %s77, %s93
      %p95 = scmp.eq.s32.totalorder %s29, 0
      %p96 = por %p94, %p95
      %s98 = sadd.s32 %s97, 1
      %p101 = scmp.eq.s32.totalorder %s23, 3
      %p102 = scmp.ne.s32.totalorder %s97, %s99
      %p103 = scmp.eq.s32.totalorder %s23, 0
      %p104 = por %p102, %p103
      %p105 = scmp.ne.s32.totalorder %s97, %s99
      %p106 = scmp.eq.s32.totalorder %s28, 3
      %p107 = por %p105, %p106
      %p108 = scmp.ne.s32.totalorder %s99, %s100
      %p109 = scmp.eq.s32.totalorder %s28, 0
      %p110 = por %p108, %p109
      %p111 = scmp.ne.s32.totalorder %s99, %s100
      %p112 = scmp.eq.s32.totalorder %s29, 3
      %p113 = por %p111, %p112
      %p115 = scmp.ne.s32.totalorder %s100, %s114
      %p116 = scmp.eq.s32.totalorder %s29, 0
      %p117 = por %p115, %p116
      %s119 = sadd.s32 %s118, 1
      %p122 = scmp.eq.s32.totalorder %s23, 3
      %p123 = scmp.ne.s32.totalorder %s118, %s120
      %p124 = scmp.eq.s32.totalorder %s23, 0
      %p125 = por %p123, %p124
      %p126 = scmp.ne.s32.totalorder %s118, %s120
      %p127 = scmp.eq.s32.totalorder %s28, 3
      %p128 = por %p126, %p127
      %p129 = scmp.ne.s32.totalorder %s120, %s121
      %p130 = scmp.eq.s32.totalorder %s28, 0
      %p131 = por %p129, %p130
      %p132 = scmp.ne.s32.totalorder %s120, %s121
      %p133 = scmp.eq.s32.totalorder %s29, 3
      %p134 = por %p132, %p133
      %p136 = scmp.ne.s32.totalorder %s121, %s135
      %p137 = scmp.eq.s32.totalorder %s29, 0
      %p138 = por %p136, %p137
      %s140 = sadd.s32 %s139, 1
      %p143 = scmp.eq.s32.totalorder %s23, 3
      %p144 = scmp.ne.s32.totalorder %s139, %s141
      %p145 = scmp.eq.s32.totalorder %s23, 0
      %p146 = por %p144, %p145
      %p147 = scmp.ne.s32.totalorder %s139, %s141
      %p148 = scmp.eq.s32.totalorder %s28, 3
      %p149 = por %p147, %p148
      %p150 = scmp.ne.s32.totalorder %s141, %s142
      %p151 = scmp.eq.s32.totalorder %s28, 0
      %p152 = por %p150, %p151
      %p153 = scmp.ne.s32.totalorder %s141, %s142
      %p154 = scmp.eq.s32.totalorder %s29, 3
      %p155 = por %p153, %p154
      %p157 = scmp.ne.s32.totalorder %s142, %s156
      %p158 = scmp.eq.s32.totalorder %s29, 0
      %p159 = por %p157, %p158
      %s161 = sadd.s32 %s160, 1
      %p164 = scmp.eq.s32.totalorder %s23, 3
      %p165 = scmp.ne.s32.totalorder %s160, %s162
      %p166 = scmp.eq.s32.totalorder %s23, 0
      %p167 = por %p165, %p166
      %p168 = scmp.ne.s32.totalorder %s160, %s162
      %p169 = scmp.eq.s32.totalorder %s28, 3
      %p170 = por %p168, %p169
      %p171 = scmp.ne.s32.totalorder %s162, %s163
      %p172 = scmp.eq.s32.totalorder %s28, 0
      %p173 = por %p171, %p172
      %p174 = scmp.ne.s32.totalorder %s162, %s163
      %p175 = scmp.eq.s32.totalorder %s29, 3
      %p176 = por %p174, %p175
      %p178 = scmp.ne.s32.totalorder %s163, %s177
      %p179 = scmp.eq.s32.totalorder %s29, 0
      %p180 = por %p178, %p179
      %s182 = sadd.s32 %s181, 1
      %p185 = scmp.eq.s32.totalorder %s23, 3
      %p186 = scmp.ne.s32.totalorder %s181, %s183
      %p187 = scmp.eq.s32.totalorder %s23, 0
      %p188 = por %p186, %p187
      %p189 = scmp.ne.s32.totalorder %s181, %s183
      %p190 = scmp.eq.s32.totalorder %s28, 3
      %p191 = por %p189, %p190
      %p192 = scmp.ne.s32.totalorder %s183, %s184
      %p193 = scmp.eq.s32.totalorder %s28, 0
      %p194 = por %p192, %p193
      %p195 = scmp.ne.s32.totalorder %s183, %s184
      %p196 = scmp.eq.s32.totalorder %s29, 3
      %p197 = por %p195, %p196
      %p199 = scmp.ne.s32.totalorder %s184, %s198
      %p200 = scmp.eq.s32.totalorder %s29, 0
      %p201 = por %p199, %p200
      %s203 = sadd.s32 %s202, 1
      %p206 = scmp.eq.s32.totalorder %s23, 3
      %p207 = scmp.ne.s32.totalorder %s202, %s204
      %p208 = scmp.eq.s32.totalorder %s23, 0
      %p209 = por %p207, %p208
      %p210 = scmp.ne.s32.totalorder %s202, %s204
      %p211 = scmp.eq.s32.totalorder %s28, 3
      %p212 = por %p210, %p211
      %p213 = scmp.ne.s32.totalorder %s204, %s205
      %p214 = scmp.eq.s32.totalorder %s28, 0
      %p215 = por %p213, %p214
      %p216 = scmp.ne.s32.totalorder %s204, %s205
      %p217 = scmp.eq.s32.totalorder %s29, 3
      %p218 = por %p216, %p217
      %p220 = scmp.ne.s32.totalorder %s205, %s219
      %p221 = scmp.eq.s32.totalorder %s29, 0
      %p222 = por %p220, %p221
      %s223 = ssub.s32 %s30, %s42
      %s224 = ssub.s32 %s31, %s38
      %s225 = sor.u32 %s223, %s224
      %p226 = scmp.eq.s32.totalorder %s225, 0
      %s228 = sadd.s32 %s227, 1
      %s229 = scalar_select %p226, %s227, %s228
      %p232 = pneg %p226
      %p233 = scmp.eq.s32.totalorder %s23, 3
      %p234 = por %p232, %p233
      %p235 = scmp.ne.s32.totalorder %s227, %s230
      %p236 = scmp.eq.s32.totalorder %s23, 0
      %p237 = por %p235, %p236
      %p238 = scmp.ne.s32.totalorder %s227, %s230
      %p239 = scmp.eq.s32.totalorder %s28, 3
      %p240 = por %p238, %p239
      %p241 = scmp.ne.s32.totalorder %s230, %s231
      %p242 = scmp.eq.s32.totalorder %s28, 0
      %p243 = por %p241, %p242
      %p244 = scmp.ne.s32.totalorder %s230, %s231
      %p245 = scmp.eq.s32.totalorder %s29, 3
      %p246 = por %p244, %p245
      %p248 = scmp.ne.s32.totalorder %s231, %s247
      %p249 = scmp.eq.s32.totalorder %s29, 0
      %p250 = por %p248, %p249
      %p251 = scmp.le.s32.totalorder 1, %s23
      %p252 = scmp.lt.s32.totalorder %s23, 5
      %p253 = pnand %p251, %p252
      %p254 = pneg %p253
      // Predicated region
      $region9: #{tpu_custom_call.1} parent=5 // pred_check
        _
      $region10: #{tpu_custom_call.1} parent=5 // pred_check_branch
        %256 = sbr.rel (%p253) target = $region12
      $region11: #{tpu_custom_call.1} parent=5 // pred_region
        %s257 = ssub.s32 %s23, 1
        // Predicated region
        $region13: #{tpu_custom_call.1} parent=11 // pred_check
          %p258 = pneg %p110
        $region14: #{tpu_custom_call.1} parent=11 // pred_check_branch
          %260 = sbr.rel (%p258) target = $region16
        $region15: #{tpu_custom_call.1} parent=11 // pred_region
          _
        $region16: #{tpu_custom_call.1} parent=11 // pred_fallthru
          _
        // Predicated region
        $region17: #{tpu_custom_call.1} parent=11 // pred_check
          %p261 = pneg %p131
        $region18: #{tpu_custom_call.1} parent=11 // pred_check_branch
          %263 = sbr.rel (%p261) target = $region20
        $region19: #{tpu_custom_call.1} parent=11 // pred_region
          _
        $region20: #{tpu_custom_call.1} parent=11 // pred_fallthru
          _
        // Predicated region
        $region21: #{tpu_custom_call.1} parent=11 // pred_check
          %p264 = pneg %p152
        $region22: #{tpu_custom_call.1} parent=11 // pred_check_branch
          %266 = sbr.rel (%p264) target = $region24
        $region23: #{tpu_custom_call.1} parent=11 // pred_region
          _
        $region24: #{tpu_custom_call.1} parent=11 // pred_fallthru
          _
        // Predicated region
        $region25: #{tpu_custom_call.1} parent=11 // pred_check
          %p267 = pneg %p173
        $region26: #{tpu_custom_call.1} parent=11 // pred_check_branch
          %269 = sbr.rel (%p267) target = $region28
        $region27: #{tpu_custom_call.1} parent=11 // pred_region
          _
        $region28: #{tpu_custom_call.1} parent=11 // pred_fallthru
          _
        // Predicated region
        $region29: #{tpu_custom_call.1} parent=11 // pred_check
          %p270 = pneg %p194
        $region30: #{tpu_custom_call.1} parent=11 // pred_check_branch
          %272 = sbr.rel (%p270) target = $region32
        $region31: #{tpu_custom_call.1} parent=11 // pred_region
          _
        $region32: #{tpu_custom_call.1} parent=11 // pred_fallthru
          _
        // Predicated region
        $region33: #{tpu_custom_call.1} parent=11 // pred_check
          %p273 = pneg %p215
        $region34: #{tpu_custom_call.1} parent=11 // pred_check_branch
          %275 = sbr.rel (%p273) target = $region36
        $region35: #{tpu_custom_call.1} parent=11 // pred_region
          _
        $region36: #{tpu_custom_call.1} parent=11 // pred_fallthru
          _
      $region12: #{tpu_custom_call.1} parent=5 // pred_fallthru
        _
      %p276 = scmp.lt.s32.totalorder %s23, 4
      // Predicated region
      $region37: #{tpu_custom_call.1} parent=5 // pred_check
        %p277 = pneg %p276
      $region38: #{tpu_custom_call.1} parent=5 // pred_check_branch
        %279 = sbr.rel (%p277) target = $region40
      $region39: #{tpu_custom_call.1} parent=5 // pred_region
        // Predicated region
        $region41: #{tpu_custom_call.1} parent=39 // pred_check
          %p280 = pneg %p57
        $region42: #{tpu_custom_call.1} parent=39 // pred_check_branch
          %282 = sbr.rel (%p280) target = $region44
        $region43: #{tpu_custom_call.1} parent=39 // pred_region
          %s283 = sand.u32 %s47, 1
          %s284 = scalar_lea.sflag [#allocation3], %s283
          %s285 = sand.u32 %s47, 1
          %s286 = smul.addr %s285, 128
          %s287 = scalar_lea.vmem [#allocation2], %s286
          %s288 = smul.u32 16, %s31
          %s290 = ssub.s32 2048, 2048
          %291 = vsyncadd %s284, %s290
          %s292 = smul.addr %s30, 32
          %s293 = sadd.s32 %s288, %s292
          %s294 = smul.addr %s293, 128
          %s295 = scalar_lea.hbm %s0, %s294
          %s296 = sshll.u32 %s287, 4
          %s297 = int_to_ptr.vmem [resolvable:$true] %s296
          %302 = dma.hbm_to_vmem [thread:$0]  %s295, 2048, %s297, %s284, 128, 128, 8
        $region44: #{tpu_custom_call.1} parent=39 // pred_fallthru
          _
        // Predicated region
        $region45: #{tpu_custom_call.1} parent=39 // pred_check
          %p303 = pneg %p83
        $region46: #{tpu_custom_call.1} parent=39 // pred_check_branch
          %305 = sbr.rel (%p303) target = $region48
        $region47: #{tpu_custom_call.1} parent=39 // pred_region
          %s306 = sand.u32 %s73, 1
          %s307 = scalar_lea.sflag [#allocation6], %s306
          %s308 = sand.u32 %s73, 1
          %s309 = smul.addr %s308, 256
          %s310 = scalar_lea.vmem [#allocation5], %s309
          %s312 = ssub.s32 4096, 4096
          %313 = vsyncadd %s307, %s312
          %s314 = smul.addr %s30, 32
          %s315 = smul.addr %s314, 128
          %s316 = scalar_lea.hbm %s1, %s315
          %s317 = sshll.u32 %s310, 4
          %s318 = int_to_ptr.vmem [resolvable:$true] %s317
          %323 = dma.hbm_to_vmem [thread:$0]  %s316, 4096, %s318, %s307, 128, 128, 8
        $region48: #{tpu_custom_call.1} parent=39 // pred_fallthru
          _
      $region40: #{tpu_custom_call.1} parent=5 // pred_fallthru
        _
      %p324 = scmp.le.s32.totalorder 1, %s23
      %p325 = scmp.lt.s32.totalorder %s23, 5
      %p326 = pnand %p324, %p325
      %p327 = pneg %p326
      // Predicated region
      $region49: #{tpu_custom_call.1} parent=5 // pred_check
        _
      $region50: #{tpu_custom_call.1} parent=5 // pred_check_branch
        %329 = sbr.rel (%p326) target = $region52
      $region51: #{tpu_custom_call.1} parent=5 // pred_region
        %s330 = ssub.s32 %s23, 1
        %s331 = sand.u32 %s50, 1
        %s332 = scalar_lea.sflag [#allocation3], %s331
        %s333 = sand.u32 %s50, 1
        %s334 = smul.addr %s333, 128
        %s335 = scalar_lea.vmem [#allocation2], %s334
        // Predicated region
        $region53: #{tpu_custom_call.1} parent=51 // pred_check
          %p336 = pneg %p63
        $region54: #{tpu_custom_call.1} parent=51 // pred_check_branch
          %338 = sbr.rel (%p336) target = $region56
        $region55: #{tpu_custom_call.1} parent=51 // pred_region
          %339 = dma.done %s332, 2048
        $region56: #{tpu_custom_call.1} parent=51 // pred_fallthru
          _
        %s340 = sand.u32 %s76, 1
        %s341 = scalar_lea.sflag [#allocation6], %s340
        %s342 = sand.u32 %s76, 1
        %s343 = smul.addr %s342, 256
        %s344 = scalar_lea.vmem [#allocation5], %s343
        // Predicated region
        $region57: #{tpu_custom_call.1} parent=51 // pred_check
          %p345 = pneg %p89
        $region58: #{tpu_custom_call.1} parent=51 // pred_check_branch
          %347 = sbr.rel (%p345) target = $region60
        $region59: #{tpu_custom_call.1} parent=51 // pred_region
          %348 = dma.done %s341, 4096
        $region60: #{tpu_custom_call.1} parent=51 // pred_fallthru
          _
        %s349 = sand.u32 %s50, 1
        %s350 = scalar_lea.sflag [#allocation3], %s349
        %s351 = sand.u32 %s50, 1
        %s352 = smul.addr %s351, 128
        %s353 = scalar_lea.vmem [#allocation2], %s352
        %p354 = pneg %p63
        %p355 = pneg %p60
        %s356 = sand.u32 %s76, 1
        %s357 = scalar_lea.sflag [#allocation6], %s356
        %s358 = sand.u32 %s76, 1
        %s359 = smul.addr %s358, 256
        %s360 = scalar_lea.vmem [#allocation5], %s359
        %p361 = pneg %p89
        %p362 = pneg %p86
        %p363 = pneg %p110
        %p364 = pneg %p107
        %p365 = pneg %p131
        %p366 = pneg %p128
        %p367 = pneg %p152
        %p368 = pneg %p149
        %p369 = pneg %p173
        %p370 = pneg %p170
        %p371 = pneg %p194
        %p372 = pneg %p191
        %p373 = pneg %p215
        %p374 = pneg %p212
        %p375 = pneg %p243
        %p376 = pneg %p240
        %s377 = sand.u32 %s230, 1
        %s378 = scalar_lea.sflag [#allocation4], %s377
        %s379 = sand.u32 %s230, 1
        %s380 = smul.addr %s379, 128
        %s381 = scalar_lea.vmem [#allocation7], %s380
        %s382 = smul.u32 16, %s33
        %s383 = smul.u32 16, %s33
        %v385 = vld [vmem:[%s335] sm:$0xff]
        %v386 = vld [vmem:[%s335 + $0x8] sm:$0xff]
        %v387 = vld [vmem:[%s335 + $0x10] sm:$0xff]
        %v388 = vld [vmem:[%s335 + $0x18] sm:$0xff]
        %v389 = vld [vmem:[%s335 + $0x20] sm:$0xff]
        %v390 = vld [vmem:[%s335 + $0x28] sm:$0xff]
        %v391 = vld [vmem:[%s335 + $0x30] sm:$0xff]
        %v392 = vld [vmem:[%s335 + $0x38] sm:$0xff]
        %v393 = vld [vmem:[%s335 + $0x40] sm:$0xff]
        %v394 = vld [vmem:[%s335 + $0x48] sm:$0xff]
        %v395 = vld [vmem:[%s335 + $0x50] sm:$0xff]
        %v396 = vld [vmem:[%s335 + $0x58] sm:$0xff]
        %v397 = vld [vmem:[%s335 + $0x60] sm:$0xff]
        %v398 = vld [vmem:[%s335 + $0x68] sm:$0xff]
        %v399 = vld [vmem:[%s335 + $0x70] sm:$0xff]
        %v400 = vld [vmem:[%s335 + $0x78] sm:$0xff]
        %v401 = vld [vmem:[%s344] sm:$0xff]
        %v402 = vld [vmem:[%s344 + $0x8] sm:$0xff]
        %v403 = vld [vmem:[%s344 + $0x10] sm:$0xff]
        %v404 = vld [vmem:[%s344 + $0x18] sm:$0xff]
        %v405 = vld [vmem:[%s344 + $0x20] sm:$0xff]
        %v406 = vld [vmem:[%s344 + $0x28] sm:$0xff]
        %v407 = vld [vmem:[%s344 + $0x30] sm:$0xff]
        %v408 = vld [vmem:[%s344 + $0x38] sm:$0xff]
        %v409 = vld [vmem:[%s344 + $0x40] sm:$0xff]
        %v410 = vld [vmem:[%s344 + $0x48] sm:$0xff]
        %v411 = vld [vmem:[%s344 + $0x50] sm:$0xff]
        %v412 = vld [vmem:[%s344 + $0x58] sm:$0xff]
        %v413 = vld [vmem:[%s344 + $0x60] sm:$0xff]
        %v414 = vld [vmem:[%s344 + $0x68] sm:$0xff]
        %v415 = vld [vmem:[%s344 + $0x70] sm:$0xff]
        %v416 = vld [vmem:[%s344 + $0x78] sm:$0xff]
        %v417 = vld [vmem:[%s344 + $0x80] sm:$0xff]
        %v418 = vld [vmem:[%s344 + $0x88] sm:$0xff]
        %v419 = vld [vmem:[%s344 + $0x90] sm:$0xff]
        %v420 = vld [vmem:[%s344 + $0x98] sm:$0xff]
        %v421 = vld [vmem:[%s344 + $0xa0] sm:$0xff]
        %v422 = vld [vmem:[%s344 + $0xa8] sm:$0xff]
        %v423 = vld [vmem:[%s344 + $0xb0] sm:$0xff]
        %v424 = vld [vmem:[%s344 + $0xb8] sm:$0xff]
        %v425 = vld [vmem:[%s344 + $0xc0] sm:$0xff]
        %v426 = vld [vmem:[%s344 + $0xc8] sm:$0xff]
        %v427 = vld [vmem:[%s344 + $0xd0] sm:$0xff]
        %v428 = vld [vmem:[%s344 + $0xd8] sm:$0xff]
        %v429 = vld [vmem:[%s344 + $0xe0] sm:$0xff]
        %v430 = vld [vmem:[%s344 + $0xe8] sm:$0xff]
        %v431 = vld [vmem:[%s344 + $0xf0] sm:$0xff]
        %v432 = vld [vmem:[%s344 + $0xf8] sm:$0xff]
        %v433 = vpack.c.bf16 %v386, %v385
        %v434 = vpack.c.bf16 %v388, %v387
        %v435 = vpack.c.bf16 %v390, %v389
        %v436 = vpack.c.bf16 %v392, %v391
        %v437 = vpack.c.bf16 %v394, %v393
        %v438 = vpack.c.bf16 %v396, %v395
        %v439 = vpack.c.bf16 %v398, %v397
        %v440 = vpack.c.bf16 %v400, %v399
        %v441 = vld [vmem:[%s2] sm:$0xff]
        %v442 = vld [vmem:[%s2 + $0x8] sm:$0xff]
        %v443 = vld [vmem:[%s2 + $0x10] sm:$0xff]
        %v444 = vld [vmem:[%s2 + $0x18] sm:$0xff]
        %v445 = vld [vmem:[%s2 + $0x20] sm:$0xff]
        %v446 = vld [vmem:[%s2 + $0x28] sm:$0xff]
        %v447 = vld [vmem:[%s2 + $0x30] sm:$0xff]
        %v448 = vld [vmem:[%s2 + $0x38] sm:$0xff]
        %v449 = vld [vmem:[%s2 + $0x40] sm:$0xff]
        %v450 = vld [vmem:[%s2 + $0x48] sm:$0xff]
        %v451 = vld [vmem:[%s2 + $0x50] sm:$0xff]
        %v452 = vld [vmem:[%s2 + $0x58] sm:$0xff]
        %v453 = vld [vmem:[%s2 + $0x60] sm:$0xff]
        %v454 = vld [vmem:[%s2 + $0x68] sm:$0xff]
        %v455 = vld [vmem:[%s2 + $0x70] sm:$0xff]
        %v456 = vld [vmem:[%s2 + $0x78] sm:$0xff]
        %v457 = vpack.c.bf16 %v442, %v441
        %v458 = vpack.c.bf16 %v444, %v443
        %v459 = vpack.c.bf16 %v446, %v445
        %v460 = vpack.c.bf16 %v448, %v447
        %v461 = vpack.c.bf16 %v450, %v449
        %v462 = vpack.c.bf16 %v452, %v451
        %v463 = vpack.c.bf16 %v454, %v453
        %v464 = vpack.c.bf16 %v456, %v455
        %v465 = vld [vmem:[%s3] sm:$0x1]
        %v467 = vlaneseq
        %v468 = vshrl.u32 %v467, 7
        %v469 = vsub.s32 0, %v468
        %v470 = vrot.slane %v465, %v469
        %472 = vmatprep.subr.bf16.mxu0 0
        %473 = vmatpush1.bf16.msra.mxu0 %v457
        %474 = vmatprep.subr.bf16.mxu0 0
        %475 = vmatpush1.bf16.msra.mxu0 %v458
        %476 = vmatprep.subr.bf16.mxu0 0
        %477 = vmatpush1.bf16.msra.mxu0 %v459
        %478 = vmatprep.subr.bf16.mxu0 0
        %479 = vmatpush1.bf16.msra.mxu0 %v460
        %480 = vmatprep.subr.bf16.mxu0 0
        %481 = vmatpush1.bf16.msra.mxu0 %v461
        %482 = vmatprep.subr.bf16.mxu0 0
        %483 = vmatpush1.bf16.msra.mxu0 %v462
        %484 = vmatprep.subr.bf16.mxu0 0
        %485 = vmatpush1.bf16.msra.mxu0 %v463
        %486 = vmatprep.subr.bf16.mxu0 0
        %487 = vmatpush1.bf16.msra.mxu0 %v464
        %488 = vmatprep.subr.bf16.mxu0 0
        %489 = vmatpush1.bf16.msra.mxu0 0
        %490 = vmatprep.subr.bf16.mxu0 0
        %491 = vmatpush1.bf16.msra.mxu0 0
        %492 = vmatprep.subr.bf16.mxu0 0
        %493 = vmatpush1.bf16.msra.mxu0 0
        %494 = vmatprep.subr.bf16.mxu0 0
        %495 = vmatpush1.bf16.msra.mxu0 0
        %496 = vmatprep.subr.bf16.mxu0 0
        %497 = vmatpush1.bf16.msra.mxu0 0
        %498 = vmatprep.subr.bf16.mxu0 0
        %499 = vmatpush1.bf16.msra.mxu0 0
        %500 = vmatprep.subr.bf16.mxu0 0
        %501 = vmatpush1.bf16.msra.mxu0 0
        %502 = vmatprep.subr.bf16.mxu0 0
        %503 = vmatpush1.bf16.msra.mxu0 0
        %504 = vmatprep.mubr.bf16.mxu0 0
        %505 = vmatmul.mubr.bf16.gmra.mrb[0].mxu0 %v433
        %v506 = vpop.f32.mrb[0].mxu0
        %v507 = vadd.f32 %v470, %v506
        %v508 = vpop.f32.mrb[0].mxu0
        %v509 = vpop.f32.mrb[0].mxu0
        %v510 = vadd.f32 %v470, %v509
        %v511 = vpop.f32.mrb[0].mxu0
        %512 = vmatprep.mubr.bf16.mxu0 0
        %513 = vmatmul.mubr.bf16.gmra.mrb[0].mxu0 %v434
        %v514 = vpop.f32.mrb[0].mxu0
        %v515 = vadd.f32 %v470, %v514
        %v516 = vpop.f32.mrb[0].mxu0
        %v517 = vpop.f32.mrb[0].mxu0
        %v518 = vadd.f32 %v470, %v517
        %v519 = vpop.f32.mrb[0].mxu0
        %520 = vmatprep.mubr.bf16.mxu0 0
        %521 = vmatmul.mubr.bf16.gmra.mrb[0].mxu0 %v435
        %v522 = vpop.f32.mrb[0].mxu0
        %v523 = vadd.f32 %v470, %v522
        %v524 = vpop.f32.mrb[0].mxu0
        %v525 = vpop.f32.mrb[0].mxu0
        %v526 = vadd.f32 %v470, %v525
        %v527 = vpop.f32.mrb[0].mxu0
        %528 = vmatprep.mubr.bf16.mxu0 0
        %529 = vmatmul.mubr.bf16.gmra.mrb[0].mxu0 %v436
        %v530 = vpop.f32.mrb[0].mxu0
        %v531 = vadd.f32 %v470, %v530
        %v532 = vpop.f32.mrb[0].mxu0
        %v533 = vpop.f32.mrb[0].mxu0
        %v534 = vadd.f32 %v470, %v533
        %v535 = vpop.f32.mrb[0].mxu0
        %536 = vmatprep.mubr.bf16.mxu0 0
        %537 = vmatmul.mubr.bf16.gmra.mrb[0].mxu0 %v437
        %v538 = vpop.f32.mrb[0].mxu0
        %v539 = vadd.f32 %v470, %v538
        %v540 = vpop.f32.mrb[0].mxu0
        %v541 = vpop.f32.mrb[0].mxu0
        %v542 = vadd.f32 %v470, %v541
        %v543 = vpop.f32.mrb[0].mxu0
        %544 = vmatprep.mubr.bf16.mxu0 0
        %545 = vmatmul.mubr.bf16.gmra.mrb[0].mxu0 %v438
        %v546 = vpop.f32.mrb[0].mxu0
        %v547 = vadd.f32 %v470, %v546
        %v548 = vpop.f32.mrb[0].mxu0
        %v549 = vpop.f32.mrb[0].mxu0
        %v550 = vadd.f32 %v470, %v549
        %v551 = vpop.f32.mrb[0].mxu0
        %552 = vmatprep.mubr.bf16.mxu0 0
        %553 = vmatmul.mubr.bf16.gmra.mrb[0].mxu0 %v439
        %v554 = vpop.f32.mrb[0].mxu0
        %v555 = vadd.f32 %v470, %v554
        %v556 = vpop.f32.mrb[0].mxu0
        %v557 = vpop.f32.mrb[0].mxu0
        %v558 = vadd.f32 %v470, %v557
        %v559 = vpop.f32.mrb[0].mxu0
        %560 = vmatprep.mubr.bf16.mxu0 0
        %561 = vmatmul.mubr.bf16.gmra.mrb[0].mxu0 %v440
        %v562 = vpop.f32.mrb[0].mxu0
        %v563 = vadd.f32 %v470, %v562
        %v564 = vpop.f32.mrb[0].mxu0
        %v565 = vpop.f32.mrb[0].mxu0
        %v566 = vadd.f32 %v470, %v565
        %v567 = vpop.f32.mrb[0].mxu0
        %568 = vdwg.mxu0
        %v569 = vpack.c.bf16 %v402, %v401
        %v570 = vpack.c.bf16 %v404, %v403
        %v571 = vpack.c.bf16 %v406, %v405
        %v572 = vpack.c.bf16 %v408, %v407
        %v573 = vpack.c.bf16 %v410, %v409
        %v574 = vpack.c.bf16 %v412, %v411
        %v575 = vpack.c.bf16 %v414, %v413
        %v576 = vpack.c.bf16 %v416, %v415
        %v577 = vpack.c.bf16 %v418, %v417
        %v578 = vpack.c.bf16 %v420, %v419
        %v579 = vpack.c.bf16 %v422, %v421
        %v580 = vpack.c.bf16 %v424, %v423
        %v581 = vpack.c.bf16 %v426, %v425
        %v582 = vpack.c.bf16 %v428, %v427
        %v583 = vpack.c.bf16 %v430, %v429
        %v584 = vpack.c.bf16 %v432, %v431
        %v585 = vld [vmem:[%s4] sm:$0xff]
        %v586 = vld [vmem:[%s4 + $0x8] sm:$0xff]
        %v587 = vld [vmem:[%s4 + $0x10] sm:$0xff]
        %v588 = vld [vmem:[%s4 + $0x18] sm:$0xff]
        %v589 = vld [vmem:[%s4 + $0x20] sm:$0xff]
        %v590 = vld [vmem:[%s4 + $0x28] sm:$0xff]
        %v591 = vld [vmem:[%s4 + $0x30] sm:$0xff]
        %v592 = vld [vmem:[%s4 + $0x38] sm:$0xff]
        %v593 = vld [vmem:[%s4 + $0x40] sm:$0xff]
        %v594 = vld [vmem:[%s4 + $0x48] sm:$0xff]
        %v595 = vld [vmem:[%s4 + $0x50] sm:$0xff]
        %v596 = vld [vmem:[%s4 + $0x58] sm:$0xff]
        %v597 = vld [vmem:[%s4 + $0x60] sm:$0xff]
        %v598 = vld [vmem:[%s4 + $0x68] sm:$0xff]
        %v599 = vld [vmem:[%s4 + $0x70] sm:$0xff]
        %v600 = vld [vmem:[%s4 + $0x78] sm:$0xff]
        %v601 = vpack.c.bf16 %v586, %v585
        %v602 = vpack.c.bf16 %v588, %v587
        %v603 = vpack.c.bf16 %v590, %v589
        %v604 = vpack.c.bf16 %v592, %v591
        %v605 = vpack.c.bf16 %v594, %v593
        %v606 = vpack.c.bf16 %v596, %v595
        %v607 = vpack.c.bf16 %v598, %v597
        %v608 = vpack.c.bf16 %v600, %v599
        %v609 = vld [vmem:[%s5] sm:$0x1]
        %v611 = vlaneseq
        %v612 = vshrl.u32 %v611, 7
        %v613 = vsub.s32 0, %v612
        %v614 = vrot.slane %v609, %v613
        %616 = vmatprep.subr.bf16.mxu0 0
        %617 = vmatpush1.bf16.msra.mxu0 %v601
        %618 = vmatprep.subr.bf16.mxu0 0
        %619 = vmatpush1.bf16.msra.mxu0 %v602
        %620 = vmatprep.subr.bf16.mxu0 0
        %621 = vmatpush1.bf16.msra.mxu0 %v603
        %622 = vmatprep.subr.bf16.mxu0 0
        %623 = vmatpush1.bf16.msra.mxu0 %v604
        %624 = vmatprep.subr.bf16.mxu0 0
        %625 = vmatpush1.bf16.msra.mxu0 %v605
        %626 = vmatprep.subr.bf16.mxu0 0
        %627 = vmatpush1.bf16.msra.mxu0 %v606
        %628 = vmatprep.subr.bf16.mxu0 0
        %629 = vmatpush1.bf16.msra.mxu0 %v607
        %630 = vmatprep.subr.bf16.mxu0 0
        %631 = vmatpush1.bf16.msra.mxu0 %v608
        %632 = vmatprep.subr.bf16.mxu0 0
        %633 = vmatpush1.bf16.msra.mxu0 0
        %634 = vmatprep.subr.bf16.mxu0 0
        %635 = vmatpush1.bf16.msra.mxu0 0
        %636 = vmatprep.subr.bf16.mxu0 0
        %637 = vmatpush1.bf16.msra.mxu0 0
        %638 = vmatprep.subr.bf16.mxu0 0
        %639 = vmatpush1.bf16.msra.mxu0 0
        %640 = vmatprep.subr.bf16.mxu0 0
        %641 = vmatpush1.bf16.msra.mxu0 0
        %642 = vmatprep.subr.bf16.mxu0 0
        %643 = vmatpush1.bf16.msra.mxu0 0
        %644 = vmatprep.subr.bf16.mxu0 0
        %645 = vmatpush1.bf16.msra.mxu0 0
        %646 = vmatprep.subr.bf16.mxu0 0
        %647 = vmatpush1.bf16.msra.mxu0 0
        %648 = vmatprep.mubr.bf16.mxu0 0
        %649 = vmatmul.mubr.bf16.gmra.mrb[0].mxu0 %v569
        %v650 = vpop.f32.mrb[0].mxu0
        %v651 = vadd.f32 %v614, %v650
        %v652 = vpop.f32.mrb[0].mxu0
        %v653 = vpop.f32.mrb[0].mxu0
        %v654 = vadd.f32 %v614, %v653
        %v655 = vpop.f32.mrb[0].mxu0
        %656 = vmatprep.mubr.bf16.mxu0 0
        %657 = vmatmul.mubr.bf16.gmra.mrb[0].mxu0 %v570
        %v658 = vpop.f32.mrb[0].mxu0
        %v659 = vadd.f32 %v614, %v658
        %v660 = vpop.f32.mrb[0].mxu0
        %v661 = vpop.f32.mrb[0].mxu0
        %v662 = vadd.f32 %v614, %v661
        %v663 = vpop.f32.mrb[0].mxu0
        %664 = vmatprep.mubr.bf16.mxu0 0
        %665 = vmatmul.mubr.bf16.gmra.mrb[0].mxu0 %v571
        %v666 = vpop.f32.mrb[0].mxu0
        %v667 = vadd.f32 %v614, %v666
        %v668 = vpop.f32.mrb[0].mxu0
        %v669 = vpop.f32.mrb[0].mxu0
        %v670 = vadd.f32 %v614, %v669
        %v671 = vpop.f32.mrb[0].mxu0
        %672 = vmatprep.mubr.bf16.mxu0 0
        %673 = vmatmul.mubr.bf16.gmra.mrb[0].mxu0 %v572
        %v674 = vpop.f32.mrb[0].mxu0
        %v675 = vadd.f32 %v614, %v674
        %v676 = vpop.f32.mrb[0].mxu0
        %v677 = vpop.f32.mrb[0].mxu0
        %v678 = vadd.f32 %v614, %v677
        %v679 = vpop.f32.mrb[0].mxu0
        %680 = vmatprep.mubr.bf16.mxu0 0
        %681 = vmatmul.mubr.bf16.gmra.mrb[0].mxu0 %v573
        %v682 = vpop.f32.mrb[0].mxu0
        %v683 = vadd.f32 %v614, %v682
        %v684 = vpop.f32.mrb[0].mxu0
        %v685 = vpop.f32.mrb[0].mxu0
        %v686 = vadd.f32 %v614, %v685
        %v687 = vpop.f32.mrb[0].mxu0
        %688 = vmatprep.mubr.bf16.mxu0 0
        %689 = vmatmul.mubr.bf16.gmra.mrb[0].mxu0 %v574
        %v690 = vpop.f32.mrb[0].mxu0
        %v691 = vadd.f32 %v614, %v690
        %v692 = vpop.f32.mrb[0].mxu0
        %v693 = vpop.f32.mrb[0].mxu0
        %v694 = vadd.f32 %v614, %v693
        %v695 = vpop.f32.mrb[0].mxu0
        %696 = vmatprep.mubr.bf16.mxu0 0
        %697 = vmatmul.mubr.bf16.gmra.mrb[0].mxu0 %v575
        %v698 = vpop.f32.mrb[0].mxu0
        %v699 = vadd.f32 %v614, %v698
        %v700 = vpop.f32.mrb[0].mxu0
        %v701 = vpop.f32.mrb[0].mxu0
        %v702 = vadd.f32 %v614, %v701
        %v703 = vpop.f32.mrb[0].mxu0
        %704 = vmatprep.mubr.bf16.mxu0 0
        %705 = vmatmul.mubr.bf16.gmra.mrb[0].mxu0 %v576
        %v706 = vpop.f32.mrb[0].mxu0
        %v707 = vadd.f32 %v614, %v706
        %v708 = vpop.f32.mrb[0].mxu0
        %v709 = vpop.f32.mrb[0].mxu0
        %v710 = vadd.f32 %v614, %v709
        %v711 = vpop.f32.mrb[0].mxu0
        %712 = vmatprep.mubr.bf16.mxu0 0
        %713 = vmatmul.mubr.bf16.gmra.mrb[0].mxu0 %v577
        %v714 = vpop.f32.mrb[0].mxu0
        %v715 = vadd.f32 %v614, %v714
        %v716 = vpop.f32.mrb[0].mxu0
        %v717 = vpop.f32.mrb[0].mxu0
        %v718 = vadd.f32 %v614, %v717
        %v719 = vpop.f32.mrb[0].mxu0
        %720 = vmatprep.mubr.bf16.mxu0 0
        %721 = vmatmul.mubr.bf16.gmra.mrb[0].mxu0 %v578
        %v722 = vpop.f32.mrb[0].mxu0
        %v723 = vadd.f32 %v614, %v722
        %v724 = vpop.f32.mrb[0].mxu0
        %v725 = vpop.f32.mrb[0].mxu0
        %v726 = vadd.f32 %v614, %v725
        %v727 = vpop.f32.mrb[0].mxu0
        %728 = vmatprep.mubr.bf16.mxu0 0
        %729 = vmatmul.mubr.bf16.gmra.mrb[0].mxu0 %v579
        %v730 = vpop.f32.mrb[0].mxu0
        %v731 = vadd.f32 %v614, %v730
        %v732 = vpop.f32.mrb[0].mxu0
        %v733 = vpop.f32.mrb[0].mxu0
        %v734 = vadd.f32 %v614, %v733
        %v735 = vpop.f32.mrb[0].mxu0
        %736 = vmatprep.mubr.bf16.mxu0 0
        %737 = vmatmul.mubr.bf16.gmra.mrb[0].mxu0 %v580
        %v738 = vpop.f32.mrb[0].mxu0
        %v739 = vadd.f32 %v614, %v738
        %v740 = vpop.f32.mrb[0].mxu0
        %v741 = vpop.f32.mrb[0].mxu0
        %v742 = vadd.f32 %v614, %v741
        %v743 = vpop.f32.mrb[0].mxu0
        %744 = vmatprep.mubr.bf16.mxu0 0
        %745 = vmatmul.mubr.bf16.gmra.mrb[0].mxu0 %v581
        %v746 = vpop.f32.mrb[0].mxu0
        %v747 = vadd.f32 %v614, %v746
        %v748 = vpop.f32.mrb[0].mxu0
        %v749 = vpop.f32.mrb[0].mxu0
        %v750 = vadd.f32 %v614, %v749
        %v751 = vpop.f32.mrb[0].mxu0
        %752 = vmatprep.mubr.bf16.mxu0 0
        %753 = vmatmul.mubr.bf16.gmra.mrb[0].mxu0 %v582
        %v754 = vpop.f32.mrb[0].mxu0
        %v755 = vadd.f32 %v614, %v754
        %v756 = vpop.f32.mrb[0].mxu0
        %v757 = vpop.f32.mrb[0].mxu0
        %v758 = vadd.f32 %v614, %v757
        %v759 = vpop.f32.mrb[0].mxu0
        %760 = vmatprep.mubr.bf16.mxu0 0
        %761 = vmatmul.mubr.bf16.gmra.mrb[0].mxu0 %v583
        %v762 = vpop.f32.mrb[0].mxu0
        %v763 = vadd.f32 %v614, %v762
        %v764 = vpop.f32.mrb[0].mxu0
        %v765 = vpop.f32.mrb[0].mxu0
        %v766 = vadd.f32 %v614, %v765
        %v767 = vpop.f32.mrb[0].mxu0
        %768 = vmatprep.mubr.bf16.mxu0 0
        %769 = vmatmul.mubr.bf16.gmra.mrb[0].mxu0 %v584
        %v770 = vpop.f32.mrb[0].mxu0
        %v771 = vadd.f32 %v614, %v770
        %v772 = vpop.f32.mrb[0].mxu0
        %v773 = vpop.f32.mrb[0].mxu0
        %v774 = vadd.f32 %v614, %v773
        %v775 = vpop.f32.mrb[0].mxu0
        %776 = vdwg.mxu0
        %v777 = vld [vmem:[%s6] sm:$0xff]
        %v778 = vld [vmem:[%s6 + $0x8] sm:$0xff]
        %v779 = vld [vmem:[%s6 + $0x10] sm:$0xff]
        %v780 = vld [vmem:[%s6 + $0x18] sm:$0xff]
        %v781 = vld [vmem:[%s6 + $0x20] sm:$0xff]
        %v782 = vld [vmem:[%s6 + $0x28] sm:$0xff]
        %v783 = vld [vmem:[%s6 + $0x30] sm:$0xff]
        %v784 = vld [vmem:[%s6 + $0x38] sm:$0xff]
        %v785 = vld [vmem:[%s6 + $0x40] sm:$0xff]
        %v786 = vld [vmem:[%s6 + $0x48] sm:$0xff]
        %v787 = vld [vmem:[%s6 + $0x50] sm:$0xff]
        %v788 = vld [vmem:[%s6 + $0x58] sm:$0xff]
        %v789 = vld [vmem:[%s6 + $0x60] sm:$0xff]
        %v790 = vld [vmem:[%s6 + $0x68] sm:$0xff]
        %v791 = vld [vmem:[%s6 + $0x70] sm:$0xff]
        %v792 = vld [vmem:[%s6 + $0x78] sm:$0xff]
        %v793 = vpack.c.bf16 %v778, %v777
        %v794 = vpack.c.bf16 %v780, %v779
        %v795 = vpack.c.bf16 %v782, %v781
        %v796 = vpack.c.bf16 %v784, %v783
        %v797 = vpack.c.bf16 %v786, %v785
        %v798 = vpack.c.bf16 %v788, %v787
        %v799 = vpack.c.bf16 %v790, %v789
        %v800 = vpack.c.bf16 %v792, %v791
        %v801 = vld [vmem:[%s7] sm:$0x1]
        %v803 = vlaneseq
        %v804 = vshrl.u32 %v803, 7
        %v805 = vsub.s32 0, %v804
        %v806 = vrot.slane %v801, %v805
        %808 = vmatprep.subr.bf16.mxu0 0
        %809 = vmatpush1.bf16.msra.mxu0 %v793
        %810 = vmatprep.subr.bf16.mxu0 0
        %811 = vmatpush1.bf16.msra.mxu0 %v794
        %812 = vmatprep.subr.bf16.mxu0 0
        %813 = vmatpush1.bf16.msra.mxu0 %v795
        %814 = vmatprep.subr.bf16.mxu0 0
        %815 = vmatpush1.bf16.msra.mxu0 %v796
        %816 = vmatprep.subr.bf16.mxu0 0
        %817 = vmatpush1.bf16.msra.mxu0 %v797
        %818 = vmatprep.subr.bf16.mxu0 0
        %819 = vmatpush1.bf16.msra.mxu0 %v798
        %820 = vmatprep.subr.bf16.mxu0 0
        %821 = vmatpush1.bf16.msra.mxu0 %v799
        %822 = vmatprep.subr.bf16.mxu0 0
        %823 = vmatpush1.bf16.msra.mxu0 %v800
        %824 = vmatprep.subr.bf16.mxu0 0
        %825 = vmatpush1.bf16.msra.mxu0 0
        %826 = vmatprep.subr.bf16.mxu0 0
        %827 = vmatpush1.bf16.msra.mxu0 0
        %828 = vmatprep.subr.bf16.mxu0 0
        %829 = vmatpush1.bf16.msra.mxu0 0
        %830 = vmatprep.subr.bf16.mxu0 0
        %831 = vmatpush1.bf16.msra.mxu0 0
        %832 = vmatprep.subr.bf16.mxu0 0
        %833 = vmatpush1.bf16.msra.mxu0 0
        %834 = vmatprep.subr.bf16.mxu0 0
        %835 = vmatpush1.bf16.msra.mxu0 0
        %836 = vmatprep.subr.bf16.mxu0 0
        %837 = vmatpush1.bf16.msra.mxu0 0
        %838 = vmatprep.subr.bf16.mxu0 0
        %839 = vmatpush1.bf16.msra.mxu0 0
        %840 = vmatprep.mubr.bf16.mxu0 0
        %841 = vmatmul.mubr.bf16.gmra.mrb[0].mxu0 %v569
        %v842 = vpop.f32.mrb[0].mxu0
        %v843 = vadd.f32 %v806, %v842
        %v844 = vpop.f32.mrb[0].mxu0
        %v845 = vpop.f32.mrb[0].mxu0
        %v846 = vadd.f32 %v806, %v845
        %v847 = vpop.f32.mrb[0].mxu0
        %848 = vmatprep.mubr.bf16.mxu0 0
        %849 = vmatmul.mubr.bf16.gmra.mrb[0].mxu0 %v570
        %v850 = vpop.f32.mrb[0].mxu0
        %v851 = vadd.f32 %v806, %v850
        %v852 = vpop.f32.mrb[0].mxu0
        %v853 = vpop.f32.mrb[0].mxu0
        %v854 = vadd.f32 %v806, %v853
        %v855 = vpop.f32.mrb[0].mxu0
        %856 = vmatprep.mubr.bf16.mxu0 0
        %857 = vmatmul.mubr.bf16.gmra.mrb[0].mxu0 %v571
        %v858 = vpop.f32.mrb[0].mxu0
        %v859 = vadd.f32 %v806, %v858
        %v860 = vpop.f32.mrb[0].mxu0
        %v861 = vpop.f32.mrb[0].mxu0
        %v862 = vadd.f32 %v806, %v861
        %v863 = vpop.f32.mrb[0].mxu0
        %864 = vmatprep.mubr.bf16.mxu0 0
        %865 = vmatmul.mubr.bf16.gmra.mrb[0].mxu0 %v572
        %v866 = vpop.f32.mrb[0].mxu0
        %v867 = vadd.f32 %v806, %v866
        %v868 = vpop.f32.mrb[0].mxu0
        %v869 = vpop.f32.mrb[0].mxu0
        %v870 = vadd.f32 %v806, %v869
        %v871 = vpop.f32.mrb[0].mxu0
        %872 = vmatprep.mubr.bf16.mxu0 0
        %873 = vmatmul.mubr.bf16.gmra.mrb[0].mxu0 %v573
        %v874 = vpop.f32.mrb[0].mxu0
        %v875 = vadd.f32 %v806, %v874
        %v876 = vpop.f32.mrb[0].mxu0
        %v877 = vpop.f32.mrb[0].mxu0
        %v878 = vadd.f32 %v806, %v877
        %v879 = vpop.f32.mrb[0].mxu0
        %880 = vmatprep.mubr.bf16.mxu0 0
        %881 = vmatmul.mubr.bf16.gmra.mrb[0].mxu0 %v574
        %v882 = vpop.f32.mrb[0].mxu0
        %v883 = vadd.f32 %v806, %v882
        %v884 = vpop.f32.mrb[0].mxu0
        %v885 = vpop.f32.mrb[0].mxu0
        %v886 = vadd.f32 %v806, %v885
        %v887 = vpop.f32.mrb[0].mxu0
        %888 = vmatprep.mubr.bf16.mxu0 0
        %889 = vmatmul.mubr.bf16.gmra.mrb[0].mxu0 %v575
        %v890 = vpop.f32.mrb[0].mxu0
        %v891 = vadd.f32 %v806, %v890
        %v892 = vpop.f32.mrb[0].mxu0
        %v893 = vpop.f32.mrb[0].mxu0
        %v894 = vadd.f32 %v806, %v893
        %v895 = vpop.f32.mrb[0].mxu0
        %896 = vmatprep.mubr.bf16.mxu0 0
        %897 = vmatmul.mubr.bf16.gmra.mrb[0].mxu0 %v576
        %v898 = vpop.f32.mrb[0].mxu0
        %v899 = vadd.f32 %v806, %v898
        %v900 = vpop.f32.mrb[0].mxu0
        %v901 = vpop.f32.mrb[0].mxu0
        %v902 = vadd.f32 %v806, %v901
        %v903 = vpop.f32.mrb[0].mxu0
        %904 = vmatprep.mubr.bf16.mxu0 0
        %905 = vmatmul.mubr.bf16.gmra.mrb[0].mxu0 %v577
        %v906 = vpop.f32.mrb[0].mxu0
        %v907 = vadd.f32 %v806, %v906
        %v908 = vpop.f32.mrb[0].mxu0
        %v909 = vpop.f32.mrb[0].mxu0
        %v910 = vadd.f32 %v806, %v909
        %v911 = vpop.f32.mrb[0].mxu0
        %912 = vmatprep.mubr.bf16.mxu0 0
        %913 = vmatmul.mubr.bf16.gmra.mrb[0].mxu0 %v578
        %v914 = vpop.f32.mrb[0].mxu0
        %v915 = vadd.f32 %v806, %v914
        %v916 = vpop.f32.mrb[0].mxu0
        %v917 = vpop.f32.mrb[0].mxu0
        %v918 = vadd.f32 %v806, %v917
        %v919 = vpop.f32.mrb[0].mxu0
        %920 = vmatprep.mubr.bf16.mxu0 0
        %921 = vmatmul.mubr.bf16.gmra.mrb[0].mxu0 %v579
        %v922 = vpop.f32.mrb[0].mxu0
        %v923 = vadd.f32 %v806, %v922
        %v924 = vpop.f32.mrb[0].mxu0
        %v925 = vpop.f32.mrb[0].mxu0
        %v926 = vadd.f32 %v806, %v925
        %v927 = vpop.f32.mrb[0].mxu0
        %928 = vmatprep.mubr.bf16.mxu0 0
        %929 = vmatmul.mubr.bf16.gmra.mrb[0].mxu0 %v580
        %v930 = vpop.f32.mrb[0].mxu0
        %v931 = vadd.f32 %v806, %v930
        %v932 = vpop.f32.mrb[0].mxu0
        %v933 = vpop.f32.mrb[0].mxu0
        %v934 = vadd.f32 %v806, %v933
        %v935 = vpop.f32.mrb[0].mxu0
        %936 = vmatprep.mubr.bf16.mxu0 0
        %937 = vmatmul.mubr.bf16.gmra.mrb[0].mxu0 %v581
        %v938 = vpop.f32.mrb[0].mxu0
        %v939 = vadd.f32 %v806, %v938
        %v940 = vpop.f32.mrb[0].mxu0
        %v941 = vpop.f32.mrb[0].mxu0
        %v942 = vadd.f32 %v806, %v941
        %v943 = vpop.f32.mrb[0].mxu0
        %944 = vmatprep.mubr.bf16.mxu0 0
        %945 = vmatmul.mubr.bf16.gmra.mrb[0].mxu0 %v582
        %v946 = vpop.f32.mrb[0].mxu0
        %v947 = vadd.f32 %v806, %v946
        %v948 = vpop.f32.mrb[0].mxu0
        %v949 = vpop.f32.mrb[0].mxu0
        %v950 = vadd.f32 %v806, %v949
        %v951 = vpop.f32.mrb[0].mxu0
        %952 = vmatprep.mubr.bf16.mxu0 0
        %953 = vmatmul.mubr.bf16.gmra.mrb[0].mxu0 %v583
        %v954 = vpop.f32.mrb[0].mxu0
        %v955 = vadd.f32 %v806, %v954
        %v956 = vpop.f32.mrb[0].mxu0
        %v957 = vpop.f32.mrb[0].mxu0
        %v958 = vadd.f32 %v806, %v957
        %v959 = vpop.f32.mrb[0].mxu0
        %960 = vmatprep.mubr.bf16.mxu0 0
        %961 = vmatmul.mubr.bf16.gmra.mrb[0].mxu0 %v584
        %v962 = vpop.f32.mrb[0].mxu0
        %v963 = vadd.f32 %v806, %v962
        %v964 = vpop.f32.mrb[0].mxu0
        %v965 = vpop.f32.mrb[0].mxu0
        %v966 = vadd.f32 %v806, %v965
        %v967 = vpop.f32.mrb[0].mxu0
        %968 = vdwg.mxu0
        %v969 = vpack.c.bf16 %v510, %v507
        %v970 = vpack.c.bf16 %v518, %v515
        %v971 = vpack.c.bf16 %v526, %v523
        %v972 = vpack.c.bf16 %v534, %v531
        %v973 = vpack.c.bf16 %v542, %v539
        %v974 = vpack.c.bf16 %v550, %v547
        %v975 = vpack.c.bf16 %v558, %v555
        %v976 = vpack.c.bf16 %v566, %v563
        %v977 = vpack.c.bf16 %v654, %v651
        %v978 = vpack.c.bf16 %v662, %v659
        %v979 = vpack.c.bf16 %v670, %v667
        %v980 = vpack.c.bf16 %v678, %v675
        %v981 = vpack.c.bf16 %v686, %v683
        %v982 = vpack.c.bf16 %v694, %v691
        %v983 = vpack.c.bf16 %v702, %v699
        %v984 = vpack.c.bf16 %v710, %v707
        %v985 = vpack.c.bf16 %v718, %v715
        %v986 = vpack.c.bf16 %v726, %v723
        %v987 = vpack.c.bf16 %v734, %v731
        %v988 = vpack.c.bf16 %v742, %v739
        %v989 = vpack.c.bf16 %v750, %v747
        %v990 = vpack.c.bf16 %v758, %v755
        %v991 = vpack.c.bf16 %v766, %v763
        %v992 = vpack.c.bf16 %v774, %v771
        %vm993 = vcmask 130048
        %v995 = vsel %vm993, %v969, 0
        %v998 = vsel %vm993, %v970, 0
        %v1001 = vsel %vm993, %v971, 0
        %v1004 = vsel %vm993, %v972, 0
        %v1007 = vsel %vm993, %v973, 0
        %v1010 = vsel %vm993, %v974, 0
        %v1013 = vsel %vm993, %v975, 0
        %v1016 = vsel %vm993, %v976, 0
        %v1019 = vsel %vm993, %v977, 0
        %v1022 = vsel %vm993, %v978, 0
        %v1025 = vsel %vm993, %v979, 0
        %v1028 = vsel %vm993, %v980, 0
        %v1031 = vsel %vm993, %v981, 0
        %v1034 = vsel %vm993, %v982, 0
        %v1037 = vsel %vm993, %v983, 0
        %v1040 = vsel %vm993, %v984, 0
        %v1043 = vsel %vm993, %v985, 0
        %v1046 = vsel %vm993, %v986, 0
        %v1049 = vsel %vm993, %v987, 0
        %v1052 = vsel %vm993, %v988, 0
        %v1055 = vsel %vm993, %v989, 0
        %v1058 = vsel %vm993, %v990, 0
        %v1061 = vsel %vm993, %v991, 0
        %v1064 = vsel %vm993, %v992, 0
        %1066 = vmatprep.subr.bf16.mxu0 0
        %1067 = vmatpush1.bf16.xpose.msra.mxu0 %v1019
        %1068 = vmatprep.subr.bf16.mxu0 0
        %1069 = vmatpush1.bf16.xpose.msra.mxu0 %v1022
        %1070 = vmatprep.subr.bf16.mxu0 0
        %1071 = vmatpush1.bf16.xpose.msra.mxu0 %v1025
        %1072 = vmatprep.subr.bf16.mxu0 0
        %1073 = vmatpush1.bf16.xpose.msra.mxu0 %v1028
        %1074 = vmatprep.subr.bf16.mxu0 0
        %1075 = vmatpush1.bf16.xpose.msra.mxu0 %v1031
        %1076 = vmatprep.subr.bf16.mxu0 0
        %1077 = vmatpush1.bf16.xpose.msra.mxu0 %v1034
        %1078 = vmatprep.subr.bf16.mxu0 0
        %1079 = vmatpush1.bf16.xpose.msra.mxu0 %v1037
        %1080 = vmatprep.subr.bf16.mxu0 0
        %1081 = vmatpush1.bf16.xpose.msra.mxu0 %v1040
        %1082 = vmatprep.subr.bf16.mxu0 0
        %1083 = vmatpush1.bf16.xpose.msra.mxu0 %v1043
        %1084 = vmatprep.subr.bf16.mxu0 0
        %1085 = vmatpush1.bf16.xpose.msra.mxu0 %v1046
        %1086 = vmatprep.subr.bf16.mxu0 0
        %1087 = vmatpush1.bf16.xpose.msra.mxu0 %v1049
        %1088 = vmatprep.subr.bf16.mxu0 0
        %1089 = vmatpush1.bf16.xpose.msra.mxu0 %v1052
        %1090 = vmatprep.subr.bf16.mxu0 0
        %1091 = vmatpush1.bf16.xpose.msra.mxu0 %v1055
        %1092 = vmatprep.subr.bf16.mxu0 0
        %1093 = vmatpush1.bf16.xpose.msra.mxu0 %v1058
        %1094 = vmatprep.subr.bf16.mxu0 0
        %1095 = vmatpush1.bf16.xpose.msra.mxu0 %v1061
        %1096 = vmatprep.subr.bf16.mxu0 0
        %1097 = vmatpush1.bf16.xpose.msra.mxu0 %v1064
        %1098 = vmatprep.mubr.bf16.mxu0 0
        %1099 = vmatmul.mubr.bf16.gmra.mrb[0].mxu0 %v995
        %v1100 = vpop.f32.mrb[0].mxu0
        %v1101 = vadd.f32 0.0, %v1100
        %v1102 = vpop.f32.mrb[0].mxu0
        %v1103 = vadd.f32 0.0, %v1102
        %v1104 = vpop.f32.mrb[0].mxu0
        %v1105 = vadd.f32 0.0, %v1104
        %v1106 = vpop.f32.mrb[0].mxu0
        %v1107 = vadd.f32 0.0, %v1106
        %1108 = vmatprep.mubr.bf16.mxu0 0
        %1109 = vmatmul.mubr.bf16.gmra.mrb[0].mxu0 %v998
        %v1110 = vpop.f32.mrb[0].mxu0
        %v1111 = vadd.f32 0.0, %v1110
        %v1112 = vpop.f32.mrb[0].mxu0
        %v1113 = vadd.f32 0.0, %v1112
        %v1114 = vpop.f32.mrb[0].mxu0
        %v1115 = vadd.f32 0.0, %v1114
        %v1116 = vpop.f32.mrb[0].mxu0
        %v1117 = vadd.f32 0.0, %v1116
        %1118 = vmatprep.mubr.bf16.mxu0 0
        %1119 = vmatmul.mubr.bf16.gmra.mrb[0].mxu0 %v1001
        %v1120 = vpop.f32.mrb[0].mxu0
        %v1121 = vadd.f32 0.0, %v1120
        %v1122 = vpop.f32.mrb[0].mxu0
        %v1123 = vadd.f32 0.0, %v1122
        %v1124 = vpop.f32.mrb[0].mxu0
        %v1125 = vadd.f32 0.0, %v1124
        %v1126 = vpop.f32.mrb[0].mxu0
        %v1127 = vadd.f32 0.0, %v1126
        %1128 = vmatprep.mubr.bf16.mxu0 0
        %1129 = vmatmul.mubr.bf16.gmra.mrb[0].mxu0 %v1004
        %v1130 = vpop.f32.mrb[0].mxu0
        %v1131 = vadd.f32 0.0, %v1130
        %v1132 = vpop.f32.mrb[0].mxu0
        %v1133 = vadd.f32 0.0, %v1132
        %v1134 = vpop.f32.mrb[0].mxu0
        %v1135 = vadd.f32 0.0, %v1134
        %v1136 = vpop.f32.mrb[0].mxu0
        %v1137 = vadd.f32 0.0, %v1136
        %1138 = vmatprep.mubr.bf16.mxu0 0
        %1139 = vmatmul.mubr.bf16.gmra.mrb[0].mxu0 %v1007
        %v1140 = vpop.f32.mrb[0].mxu0
        %v1141 = vadd.f32 0.0, %v1140
        %v1142 = vpop.f32.mrb[0].mxu0
        %v1143 = vadd.f32 0.0, %v1142
        %v1144 = vpop.f32.mrb[0].mxu0
        %v1145 = vadd.f32 0.0, %v1144
        %v1146 = vpop.f32.mrb[0].mxu0
        %v1147 = vadd.f32 0.0, %v1146
        %1148 = vmatprep.mubr.bf16.mxu0 0
        %1149 = vmatmul.mubr.bf16.gmra.mrb[0].mxu0 %v1010
        %v1150 = vpop.f32.mrb[0].mxu0
        %v1151 = vadd.f32 0.0, %v1150
        %v1152 = vpop.f32.mrb[0].mxu0
        %v1153 = vadd.f32 0.0, %v1152
        %v1154 = vpop.f32.mrb[0].mxu0
        %v1155 = vadd.f32 0.0, %v1154
        %v1156 = vpop.f32.mrb[0].mxu0
        %v1157 = vadd.f32 0.0, %v1156
        %1158 = vmatprep.mubr.bf16.mxu0 0
        %1159 = vmatmul.mubr.bf16.gmra.mrb[0].mxu0 %v1013
        %v1160 = vpop.f32.mrb[0].mxu0
        %v1161 = vadd.f32 0.0, %v1160
        %v1162 = vpop.f32.mrb[0].mxu0
        %v1163 = vadd.f32 0.0, %v1162
        %v1164 = vpop.f32.mrb[0].mxu0
        %v1165 = vadd.f32 0.0, %v1164
        %v1166 = vpop.f32.mrb[0].mxu0
        %v1167 = vadd.f32 0.0, %v1166
        %1168 = vmatprep.mubr.bf16.mxu0 0
        %1169 = vmatmul.mubr.bf16.gmra.mrb[0].mxu0 %v1016
        %v1170 = vpop.f32.mrb[0].mxu0
        %v1171 = vadd.f32 0.0, %v1170
        %v1172 = vpop.f32.mrb[0].mxu0
        %v1173 = vadd.f32 0.0, %v1172
        %v1174 = vpop.f32.mrb[0].mxu0
        %v1175 = vadd.f32 0.0, %v1174
        %v1176 = vpop.f32.mrb[0].mxu0
        %v1177 = vadd.f32 0.0, %v1176
        %1178 = vdwg.mxu0
        %v1179 = vmax.f32 %v1101, %v1103
        %1180 = vmax.xlane.f32.xlu0 %v1179
        %v1181 = vpop.xlane.xlu0 %1180
        %v1182 = vmax.f32 %v1105, %v1107
        %1183 = vmax.xlane.f32.xlu0 %v1182
        %v1184 = vpop.xlane.xlu0 %1183
        %v1185 = vmax.f32 %v1111, %v1113
        %1186 = vmax.xlane.f32.xlu0 %v1185
        %v1187 = vpop.xlane.xlu0 %1186
        %v1188 = vmax.f32 %v1115, %v1117
        %1189 = vmax.xlane.f32.xlu0 %v1188
        %v1190 = vpop.xlane.xlu0 %1189
        %v1191 = vmax.f32 %v1121, %v1123
        %1192 = vmax.xlane.f32.xlu0 %v1191
        %v1193 = vpop.xlane.xlu0 %1192
        %v1194 = vmax.f32 %v1125, %v1127
        %1195 = vmax.xlane.f32.xlu0 %v1194
        %v1196 = vpop.xlane.xlu0 %1195
        %v1197 = vmax.f32 %v1131, %v1133
        %1198 = vmax.xlane.f32.xlu0 %v1197
        %v1199 = vpop.xlane.xlu0 %1198
        %v1200 = vmax.f32 %v1135, %v1137
        %1201 = vmax.xlane.f32.xlu0 %v1200
        %v1202 = vpop.xlane.xlu0 %1201
        %v1203 = vmax.f32 %v1141, %v1143
        %1204 = vmax.xlane.f32.xlu0 %v1203
        %v1205 = vpop.xlane.xlu0 %1204
        %v1206 = vmax.f32 %v1145, %v1147
        %1207 = vmax.xlane.f32.xlu0 %v1206
        %v1208 = vpop.xlane.xlu0 %1207
        %v1209 = vmax.f32 %v1151, %v1153
        %1210 = vmax.xlane.f32.xlu0 %v1209
        %v1211 = vpop.xlane.xlu0 %1210
        %v1212 = vmax.f32 %v1155, %v1157
        %1213 = vmax.xlane.f32.xlu0 %v1212
        %v1214 = vpop.xlane.xlu0 %1213
        %v1215 = vmax.f32 %v1161, %v1163
        %1216 = vmax.xlane.f32.xlu0 %v1215
        %v1217 = vpop.xlane.xlu0 %1216
        %v1218 = vmax.f32 %v1165, %v1167
        %1219 = vmax.xlane.f32.xlu0 %v1218
        %v1220 = vpop.xlane.xlu0 %1219
        %v1221 = vmax.f32 %v1171, %v1173
        %1222 = vmax.xlane.f32.xlu0 %v1221
        %v1223 = vpop.xlane.xlu0 %1222
        %v1224 = vmax.f32 %v1175, %v1177
        %1225 = vmax.xlane.f32.xlu0 %v1224
        %v1226 = vpop.xlane.xlu0 %1225
        %v1227 = vsub.f32 %v1101, %v1181
        %v1228 = vsub.f32 %v1103, %v1181
        %v1229 = vsub.f32 %v1105, %v1184
        %v1230 = vsub.f32 %v1107, %v1184
        %v1231 = vsub.f32 %v1111, %v1187
        %v1232 = vsub.f32 %v1113, %v1187
        %v1233 = vsub.f32 %v1115, %v1190
        %v1234 = vsub.f32 %v1117, %v1190
        %v1235 = vsub.f32 %v1121, %v1193
        %v1236 = vsub.f32 %v1123, %v1193
        %v1237 = vsub.f32 %v1125, %v1196
        %v1238 = vsub.f32 %v1127, %v1196
        %v1239 = vsub.f32 %v1131, %v1199
        %v1240 = vsub.f32 %v1133, %v1199
        %v1241 = vsub.f32 %v1135, %v1202
        %v1242 = vsub.f32 %v1137, %v1202
        %v1243 = vsub.f32 %v1141, %v1205
        %v1244 = vsub.f32 %v1143, %v1205
        %v1245 = vsub.f32 %v1145, %v1208
        %v1246 = vsub.f32 %v1147, %v1208
        %v1247 = vsub.f32 %v1151, %v1211
        %v1248 = vsub.f32 %v1153, %v1211
        %v1249 = vsub.f32 %v1155, %v1214
        %v1250 = vsub.f32 %v1157, %v1214
        %v1251 = vsub.f32 %v1161, %v1217
        %v1252 = vsub.f32 %v1163, %v1217
        %v1253 = vsub.f32 %v1165, %v1220
        %v1254 = vsub.f32 %v1167, %v1220
        %v1255 = vsub.f32 %v1171, %v1223
        %v1256 = vsub.f32 %v1173, %v1223
        %v1257 = vsub.f32 %v1175, %v1226
        %v1258 = vsub.f32 %v1177, %v1226
        %v1259 = vmul.f32 %v1227, 1.442695
        %v1260 = vpow.pop %v1259
        %v1261 = vmul.f32 %v1228, 1.442695
        %v1262 = vpow.pop %v1261
        %v1263 = vmul.f32 %v1229, 1.442695
        %v1264 = vpow.pop %v1263
        %v1265 = vmul.f32 %v1230, 1.442695
        %v1266 = vpow.pop %v1265
        %v1267 = vmul.f32 %v1231, 1.442695
        %v1268 = vpow.pop %v1267
        %v1269 = vmul.f32 %v1232, 1.442695
        %v1270 = vpow.pop %v1269
        %v1271 = vmul.f32 %v1233, 1.442695
        %v1272 = vpow.pop %v1271
        %v1273 = vmul.f32 %v1234, 1.442695
        %v1274 = vpow.pop %v1273
        %v1275 = vmul.f32 %v1235, 1.442695
        %v1276 = vpow.pop %v1275
        %v1277 = vmul.f32 %v1236, 1.442695
        %v1278 = vpow.pop %v1277
        %v1279 = vmul.f32 %v1237, 1.442695
        %v1280 = vpow.pop %v1279
        %v1281 = vmul.f32 %v1238, 1.442695
        %v1282 = vpow.pop %v1281
        %v1283 = vmul.f32 %v1239, 1.442695
        %v1284 = vpow.pop %v1283
        %v1285 = vmul.f32 %v1240, 1.442695
        %v1286 = vpow.pop %v1285
        %v1287 = vmul.f32 %v1241, 1.442695
        %v1288 = vpow.pop %v1287
        %v1289 = vmul.f32 %v1242, 1.442695
        %v1290 = vpow.pop %v1289
        %v1291 = vmul.f32 %v1243, 1.442695
        %v1292 = vpow.pop %v1291
        %v1293 = vmul.f32 %v1244, 1.442695
        %v1294 = vpow.pop %v1293
        %v1295 = vmul.f32 %v1245, 1.442695
        %v1296 = vpow.pop %v1295
        %v1297 = vmul.f32 %v1246, 1.442695
        %v1298 = vpow.pop %v1297
        %v1299 = vmul.f32 %v1247, 1.442695
        %v1300 = vpow.pop %v1299
        %v1301 = vmul.f32 %v1248, 1.442695
        %v1302 = vpow.pop %v1301
        %v1303 = vmul.f32 %v1249, 1.442695
        %v1304 = vpow.pop %v1303
        %v1305 = vmul.f32 %v1250, 1.442695
        %v1306 = vpow.pop %v1305
        %v1307 = vmul.f32 %v1251, 1.442695
        %v1308 = vpow.pop %v1307
        %v1309 = vmul.f32 %v1252, 1.442695
        %v1310 = vpow.pop %v1309
        %v1311 = vmul.f32 %v1253, 1.442695
        %v1312 = vpow.pop %v1311
        %v1313 = vmul.f32 %v1254, 1.442695
        %v1314 = vpow.pop %v1313
        %v1315 = vmul.f32 %v1255, 1.442695
        %v1316 = vpow.pop %v1315
        %v1317 = vmul.f32 %v1256, 1.442695
        %v1318 = vpow.pop %v1317
        %v1319 = vmul.f32 %v1257, 1.442695
        %v1320 = vpow.pop %v1319
        %v1321 = vmul.f32 %v1258, 1.442695
        %v1322 = vpow.pop %v1321
        %v1323 = vadd.f32 %v1260, %v1262
        %1324 = vadd.xlane.f32.xlu0 %v1323
        %v1325 = vpop.xlane.xlu0 %1324
        %v1326 = vadd.f32 %v1264, %v1266
        %1327 = vadd.xlane.f32.xlu0 %v1326
        %v1328 = vpop.xlane.xlu0 %1327
        %v1329 = vadd.f32 %v1268, %v1270
        %1330 = vadd.xlane.f32.xlu0 %v1329
        %v1331 = vpop.xlane.xlu0 %1330
        %v1332 = vadd.f32 %v1272, %v1274
        %1333 = vadd.xlane.f32.xlu0 %v1332
        %v1334 = vpop.xlane.xlu0 %1333
        %v1335 = vadd.f32 %v1276, %v1278
        %1336 = vadd.xlane.f32.xlu0 %v1335
        %v1337 = vpop.xlane.xlu0 %1336
        %v1338 = vadd.f32 %v1280, %v1282
        %1339 = vadd.xlane.f32.xlu0 %v1338
        %v1340 = vpop.xlane.xlu0 %1339
        %v1341 = vadd.f32 %v1284, %v1286
        %1342 = vadd.xlane.f32.xlu0 %v1341
        %v1343 = vpop.xlane.xlu0 %1342
        %v1344 = vadd.f32 %v1288, %v1290
        %1345 = vadd.xlane.f32.xlu0 %v1344
        %v1346 = vpop.xlane.xlu0 %1345
        %v1347 = vadd.f32 %v1292, %v1294
        %1348 = vadd.xlane.f32.xlu0 %v1347
        %v1349 = vpop.xlane.xlu0 %1348
        %v1350 = vadd.f32 %v1296, %v1298
        %1351 = vadd.xlane.f32.xlu0 %v1350
        %v1352 = vpop.xlane.xlu0 %1351
        %v1353 = vadd.f32 %v1300, %v1302
        %1354 = vadd.xlane.f32.xlu0 %v1353
        %v1355 = vpop.xlane.xlu0 %1354
        %v1356 = vadd.f32 %v1304, %v1306
        %1357 = vadd.xlane.f32.xlu0 %v1356
        %v1358 = vpop.xlane.xlu0 %1357
        %v1359 = vadd.f32 %v1308, %v1310
        %1360 = vadd.xlane.f32.xlu0 %v1359
        %v1361 = vpop.xlane.xlu0 %1360
        %v1362 = vadd.f32 %v1312, %v1314
        %1363 = vadd.xlane.f32.xlu0 %v1362
        %v1364 = vpop.xlane.xlu0 %1363
        %v1365 = vadd.f32 %v1316, %v1318
        %1366 = vadd.xlane.f32.xlu0 %v1365
        %v1367 = vpop.xlane.xlu0 %1366
        %v1368 = vadd.f32 %v1320, %v1322
        %1369 = vadd.xlane.f32.xlu0 %v1368
        %v1370 = vpop.xlane.xlu0 %1369
        %v1371 = vpack.c.bf16 %v1264, %v1260
        %v1372 = vpack.c.bf16 %v1266, %v1262
        %v1373 = vpack.c.bf16 %v1272, %v1268
        %v1374 = vpack.c.bf16 %v1274, %v1270
        %v1375 = vpack.c.bf16 %v1280, %v1276
        %v1376 = vpack.c.bf16 %v1282, %v1278
        %v1377 = vpack.c.bf16 %v1288, %v1284
        %v1378 = vpack.c.bf16 %v1290, %v1286
        %v1379 = vpack.c.bf16 %v1296, %v1292
        %v1380 = vpack.c.bf16 %v1298, %v1294
        %v1381 = vpack.c.bf16 %v1304, %v1300
        %v1382 = vpack.c.bf16 %v1306, %v1302
        %v1383 = vpack.c.bf16 %v1312, %v1308
        %v1384 = vpack.c.bf16 %v1314, %v1310
        %v1385 = vpack.c.bf16 %v1320, %v1316
        %v1386 = vpack.c.bf16 %v1322, %v1318
        %v1387 = vpack.c.bf16 %v846, %v843
        %v1388 = vpack.c.bf16 %v854, %v851
        %v1389 = vpack.c.bf16 %v862, %v859
        %v1390 = vpack.c.bf16 %v870, %v867
        %v1391 = vpack.c.bf16 %v878, %v875
        %v1392 = vpack.c.bf16 %v886, %v883
        %v1393 = vpack.c.bf16 %v894, %v891
        %v1394 = vpack.c.bf16 %v902, %v899
        %v1395 = vpack.c.bf16 %v910, %v907
        %v1396 = vpack.c.bf16 %v918, %v915
        %v1397 = vpack.c.bf16 %v926, %v923
        %v1398 = vpack.c.bf16 %v934, %v931
        %v1399 = vpack.c.bf16 %v942, %v939
        %v1400 = vpack.c.bf16 %v950, %v947
        %v1401 = vpack.c.bf16 %v958, %v955
        %v1402 = vpack.c.bf16 %v966, %v963
        %1403 = vmatprep.subr.bf16.mxu0 0
        %1404 = vmatpush1.bf16.msra.mxu0 %v1387
        %1405 = vmatprep.subr.bf16.mxu0 0
        %1406 = vmatpush1.bf16.msra.mxu0 %v1388
        %1407 = vmatprep.subr.bf16.mxu0 0
        %1408 = vmatpush1.bf16.msra.mxu0 %v1389
        %1409 = vmatprep.subr.bf16.mxu0 0
        %1410 = vmatpush1.bf16.msra.mxu0 %v1390
        %1411 = vmatprep.subr.bf16.mxu0 0
        %1412 = vmatpush1.bf16.msra.mxu0 %v1391
        %1413 = vmatprep.subr.bf16.mxu0 0
        %1414 = vmatpush1.bf16.msra.mxu0 %v1392
        %1415 = vmatprep.subr.bf16.mxu0 0
        %1416 = vmatpush1.bf16.msra.mxu0 %v1393
        %1417 = vmatprep.subr.bf16.mxu0 0
        %1418 = vmatpush1.bf16.msra.mxu0 %v1394
        %1419 = vmatprep.subr.bf16.mxu0 0
        %1420 = vmatpush1.bf16.msra.mxu0 %v1395
        %1421 = vmatprep.subr.bf16.mxu0 0
        %1422 = vmatpush1.bf16.msra.mxu0 %v1396
        %1423 = vmatprep.subr.bf16.mxu0 0
        %1424 = vmatpush1.bf16.msra.mxu0 %v1397
        %1425 = vmatprep.subr.bf16.mxu0 0
        %1426 = vmatpush1.bf16.msra.mxu0 %v1398
        %1427 = vmatprep.subr.bf16.mxu0 0
        %1428 = vmatpush1.bf16.msra.mxu0 %v1399
        %1429 = vmatprep.subr.bf16.mxu0 0
        %1430 = vmatpush1.bf16.msra.mxu0 %v1400
        %1431 = vmatprep.subr.bf16.mxu0 0
        %1432 = vmatpush1.bf16.msra.mxu0 %v1401
        %1433 = vmatprep.subr.bf16.mxu0 0
        %1434 = vmatpush1.bf16.msra.mxu0 %v1402
        %1435 = vmatprep.mubr.bf16.mxu0 %v1372
        %1436 = vmatmul.mubr.bf16.gmra.mrb[0].mxu0 %v1371
        %v1437 = vpop.f32.mrb[0].mxu0
        %v1438 = vadd.f32 0.0, %v1437
        %v1439 = vpop.f32.mrb[0].mxu0
        %v1440 = vpop.f32.mrb[0].mxu0
        %v1441 = vadd.f32 0.0, %v1440
        %v1442 = vpop.f32.mrb[0].mxu0
        %1443 = vmatprep.mubr.bf16.mxu0 %v1374
        %1444 = vmatmul.mubr.bf16.gmra.mrb[0].mxu0 %v1373
        %v1445 = vpop.f32.mrb[0].mxu0
        %v1446 = vadd.f32 0.0, %v1445
        %v1447 = vpop.f32.mrb[0].mxu0
        %v1448 = vpop.f32.mrb[0].mxu0
        %v1449 = vadd.f32 0.0, %v1448
        %v1450 = vpop.f32.mrb[0].mxu0
        %1451 = vmatprep.mubr.bf16.mxu0 %v1376
        %1452 = vmatmul.mubr.bf16.gmra.mrb[0].mxu0 %v1375
        %v1453 = vpop.f32.mrb[0].mxu0
        %v1454 = vadd.f32 0.0, %v1453
        %v1455 = vpop.f32.mrb[0].mxu0
        %v1456 = vpop.f32.mrb[0].mxu0
        %v1457 = vadd.f32 0.0, %v1456
        %v1458 = vpop.f32.mrb[0].mxu0
        %1459 = vmatprep.mubr.bf16.mxu0 %v1378
        %1460 = vmatmul.mubr.bf16.gmra.mrb[0].mxu0 %v1377
        %v1461 = vpop.f32.mrb[0].mxu0
        %v1462 = vadd.f32 0.0, %v1461
        %v1463 = vpop.f32.mrb[0].mxu0
        %v1464 = vpop.f32.mrb[0].mxu0
        %v1465 = vadd.f32 0.0, %v1464
        %v1466 = vpop.f32.mrb[0].mxu0
        %1467 = vmatprep.mubr.bf16.mxu0 %v1380
        %1468 = vmatmul.mubr.bf16.gmra.mrb[0].mxu0 %v1379
        %v1469 = vpop.f32.mrb[0].mxu0
        %v1470 = vadd.f32 0.0, %v1469
        %v1471 = vpop.f32.mrb[0].mxu0
        %v1472 = vpop.f32.mrb[0].mxu0
        %v1473 = vadd.f32 0.0, %v1472
        %v1474 = vpop.f32.mrb[0].mxu0
        %1475 = vmatprep.mubr.bf16.mxu0 %v1382
        %1476 = vmatmul.mubr.bf16.gmra.mrb[0].mxu0 %v1381
        %v1477 = vpop.f32.mrb[0].mxu0
        %v1478 = vadd.f32 0.0, %v1477
        %v1479 = vpop.f32.mrb[0].mxu0
        %v1480 = vpop.f32.mrb[0].mxu0
        %v1481 = vadd.f32 0.0, %v1480
        %v1482 = vpop.f32.mrb[0].mxu0
        %1483 = vmatprep.mubr.bf16.mxu0 %v1384
        %1484 = vmatmul.mubr.bf16.gmra.mrb[0].mxu0 %v1383
        %v1485 = vpop.f32.mrb[0].mxu0
        %v1486 = vadd.f32 0.0, %v1485
        %v1487 = vpop.f32.mrb[0].mxu0
        %v1488 = vpop.f32.mrb[0].mxu0
        %v1489 = vadd.f32 0.0, %v1488
        %v1490 = vpop.f32.mrb[0].mxu0
        %1491 = vmatprep.mubr.bf16.mxu0 %v1386
        %1492 = vmatmul.mubr.bf16.gmra.mrb[0].mxu0 %v1385
        %v1493 = vpop.f32.mrb[0].mxu0
        %v1494 = vadd.f32 0.0, %v1493
        %v1495 = vpop.f32.mrb[0].mxu0
        %v1496 = vpop.f32.mrb[0].mxu0
        %v1497 = vadd.f32 0.0, %v1496
        %v1498 = vpop.f32.mrb[0].mxu0
        %1499 = vdwg.mxu0
        %v1500 = vrcp.pop %v1325
        %v1501 = vrcp.pop %v1328
        %v1502 = vrcp.pop %v1331
        %v1503 = vrcp.pop %v1334
        %v1504 = vrcp.pop %v1337
        %v1505 = vrcp.pop %v1340
        %v1506 = vrcp.pop %v1343
        %v1507 = vrcp.pop %v1346
        %v1508 = vrcp.pop %v1349
        %v1509 = vrcp.pop %v1352
        %v1510 = vrcp.pop %v1355
        %v1511 = vrcp.pop %v1358
        %v1512 = vrcp.pop %v1361
        %v1513 = vrcp.pop %v1364
        %v1514 = vrcp.pop %v1367
        %v1515 = vrcp.pop %v1370
        %v1516 = vmul.f32 %v1438, %v1500
        %v1517 = vmul.f32 %v1441, %v1501
        %v1518 = vmul.f32 %v1446, %v1502
        %v1519 = vmul.f32 %v1449, %v1503
        %v1520 = vmul.f32 %v1454, %v1504
        %v1521 = vmul.f32 %v1457, %v1505
        %v1522 = vmul.f32 %v1462, %v1506
        %v1523 = vmul.f32 %v1465, %v1507
        %v1524 = vmul.f32 %v1470, %v1508
        %v1525 = vmul.f32 %v1473, %v1509
        %v1526 = vmul.f32 %v1478, %v1510
        %v1527 = vmul.f32 %v1481, %v1511
        %v1528 = vmul.f32 %v1486, %v1512
        %v1529 = vmul.f32 %v1489, %v1513
        %v1530 = vmul.f32 %v1494, %v1514
        %v1531 = vmul.f32 %v1497, %v1515
        %v1532 = vadd.f32 %v1516, %v385
        %v1533 = vadd.f32 %v1517, %v386
        %v1534 = vadd.f32 %v1518, %v387
        %v1535 = vadd.f32 %v1519, %v388
        %v1536 = vadd.f32 %v1520, %v389
        %v1537 = vadd.f32 %v1521, %v390
        %v1538 = vadd.f32 %v1522, %v391
        %v1539 = vadd.f32 %v1523, %v392
        %v1540 = vadd.f32 %v1524, %v393
        %v1541 = vadd.f32 %v1525, %v394
        %v1542 = vadd.f32 %v1526, %v395
        %v1543 = vadd.f32 %v1527, %v396
        %v1544 = vadd.f32 %v1528, %v397
        %v1545 = vadd.f32 %v1529, %v398
        %v1546 = vadd.f32 %v1530, %v399
        %v1547 = vadd.f32 %v1531, %v400
        %1548 = vst [vmem:[%s381] sm:$0xff] %v1532
        %1549 = vst [vmem:[%s381 + $0x8] sm:$0xff] %v1533
        %1550 = vst [vmem:[%s381 + $0x10] sm:$0xff] %v1534
        %1551 = vst [vmem:[%s381 + $0x18] sm:$0xff] %v1535
        %1552 = vst [vmem:[%s381 + $0x20] sm:$0xff] %v1536
        %1553 = vst [vmem:[%s381 + $0x28] sm:$0xff] %v1537
        %1554 = vst [vmem:[%s381 + $0x30] sm:$0xff] %v1538
        %1555 = vst [vmem:[%s381 + $0x38] sm:$0xff] %v1539
        %1556 = vst [vmem:[%s381 + $0x40] sm:$0xff] %v1540
        %1557 = vst [vmem:[%s381 + $0x48] sm:$0xff] %v1541
        %1558 = vst [vmem:[%s381 + $0x50] sm:$0xff] %v1542
        %1559 = vst [vmem:[%s381 + $0x58] sm:$0xff] %v1543
        %1560 = vst [vmem:[%s381 + $0x60] sm:$0xff] %v1544
        %1561 = vst [vmem:[%s381 + $0x68] sm:$0xff] %v1545
        %1562 = vst [vmem:[%s381 + $0x70] sm:$0xff] %v1546
        %1563 = vst [vmem:[%s381 + $0x78] sm:$0xff] %v1547
        %s1564 = sand.u32 %s230, 1
        %s1565 = scalar_lea.sflag [#allocation4], %s1564
        %s1566 = sand.u32 %s230, 1
        %s1567 = smul.addr %s1566, 128
        %s1568 = scalar_lea.vmem [#allocation7], %s1567
        // Predicated region
        $region61: #{tpu_custom_call.1} parent=51 // pred_check
          %p1569 = pneg %p240
        $region62: #{tpu_custom_call.1} parent=51 // pred_check_branch
          %1571 = sbr.rel (%p1569) target = $region64
        $region63: #{tpu_custom_call.1} parent=51 // pred_region
          %s1572 = smul.u32 16, %s33
          %s1574 = ssub.s32 2048, 2048
          %1575 = vsyncadd %s1565, %s1574
          %s1576 = smul.addr %s32, 32
          %s1577 = sadd.s32 %s1572, %s1576
          %s1578 = smul.addr %s1577, 128
          %s1579 = scalar_lea.hbm %s8, %s1578
          %s1580 = sshll.u32 %s1568, 4
          %s1581 = int_to_ptr.vmem [resolvable:$true] %s1580
          %1586 = dma.vmem_to_hbm [thread:$0]  %s1581, 2048, %s1579, %s1565, 128, 128, 8
        $region64: #{tpu_custom_call.1} parent=51 // pred_fallthru
          _
      $region52: #{tpu_custom_call.1} parent=5 // pred_fallthru
        _
      %p1587 = scmp.le.s32.totalorder 2, %s23
      // Predicated region
      $region65: #{tpu_custom_call.1} parent=5 // pred_check
        %p1588 = pneg %p1587
      $region66: #{tpu_custom_call.1} parent=5 // pred_check_branch
        %1590 = sbr.rel (%p1588) target = $region68
      $region67: #{tpu_custom_call.1} parent=5 // pred_region
        %s1591 = ssub.s32 %s23, 2
        // Predicated region
        $region69: #{tpu_custom_call.1} parent=67 // pred_check
          %p1592 = pneg %p246
        $region70: #{tpu_custom_call.1} parent=67 // pred_check_branch
          %1594 = sbr.rel (%p1592) target = $region72
        $region71: #{tpu_custom_call.1} parent=67 // pred_region
          %s1595 = sand.u32 %s231, 1
          %s1596 = scalar_lea.sflag [#allocation4], %s1595
          %s1597 = sand.u32 %s231, 1
          %s1598 = smul.addr %s1597, 128
          %s1599 = scalar_lea.vmem [#allocation7], %s1598
          %1600 = dma.done %s1596, 2048
        $region72: #{tpu_custom_call.1} parent=67 // pred_fallthru
          _
      $region68: #{tpu_custom_call.1} parent=5 // pred_fallthru
        _
    $region6: #{tpu_custom_call.1} parent=1 // loop_footer
      %s27 = sadd.s32 1, %s23
    $region7: #{tpu_custom_call.1} parent=1 // loop_footer_branch
      %22 = sbr.rel target = $region3
    $region8: #{tpu_custom_call.1} parent=1 // loop_exit
      _
    %1601 = vsyncpa [#allocation3], 1
    %s1602 = scalar_lea.sflag [#allocation3], 1
    %1603 = vsyncpa %s1602, 1
    %1604 = vsyncpa [#allocation6], 1
    %s1605 = scalar_lea.sflag [#allocation6], 1
    %1606 = vsyncpa %s1605, 1
    %1607 = vsyncpa [#allocation4], 1
    %s1608 = scalar_lea.sflag [#allocation4], 1
    %1609 = vsyncpa %s1608, 1

</llo_original>
